<compile_context>
chip_gen: v7x
topology: tpu7x:2x2x1
jax: 0.10.0
libtpu: 0.0.40
codegen_flags: <defaults>
</compile_context>

<pallas_src>
import math
import jax
import jax.numpy as jnp
from jax.experimental import pallas as pl
from jax.experimental.pallas import tpu as pltpu


# ---------------------------------------------------------------------------
# Fused kernel: attention + aggregation + flat-padded depthwise + pointwise
# ---------------------------------------------------------------------------
def make_dyconv_kernel(H, W, C, ks, pad, temperature, use_bf16):
    Hp, Wp = H + 2 * pad, W + 2 * pad
    Ho, Wo = Hp - ks + 1, Wp - ks + 1
    L_out = (Ho - 1) * Wp + Wo          # flat "wide output" span (junk cols dropped later)
    inv_hw = 1.0 / float(H * W)
    inv_t = 1.0 / float(temperature)
    mm_dtype = jnp.bfloat16 if use_bf16 else jnp.float32

    def kernel(xf_ref, fc1_ref, fc2_ref, fc2b_ref, w1t_ref, bkt_ref,
               pw_ref, pwb_ref, o_ref, xp_ref):
        # xf_ref  : (1, C, H*W)    one sample: channels on sublanes, flat spatial on lanes
        # fc1_ref : (hidden, C)    attention fc1 weight
        # fc2_ref : (K, hidden)    attention fc2 weight
        # fc2b_ref: (K, 1)         attention fc2 bias
        # w1t_ref : (ks*ks*C, K)   depthwise kernel bank, rows ordered (kh, kw, c)
        # bkt_ref : (C, K)         depthwise bias bank transposed (O == C)
        # pw_ref  : (O, C)         pointwise 1x1 weight
        # pwb_ref : (O, 1)         pointwise bias
        # o_ref   : (1, O, L_out)  lane-dense flat output slab
        # xp_ref  : (C, Hp*Wp)     flat zero-padded activation scratch (VMEM)
        xv = xf_ref[0]                                                # (C, H*W)

        # ---- attention2d: global avg pool -> fc1 -> relu -> fc2 -> softmax(./T)
        # (column-oriented so channels stay on sublanes; these matmuls are tiny)
        pooled = jnp.sum(xv, axis=1, keepdims=True) * inv_hw          # (C, 1)
        h = jnp.maximum(
            jnp.dot(fc1_ref[...], pooled, preferred_element_type=jnp.float32), 0.0)
        logits = (jnp.dot(fc2_ref[...], h, preferred_element_type=jnp.float32)
                  + fc2b_ref[...])                                    # (K, 1)
        z = logits * inv_t
        z = z - jnp.max(z, axis=0, keepdims=True)
        e = jnp.exp(z)
        att = e / jnp.sum(e, axis=0, keepdims=True)                   # (K, 1)

        # ---- per-sample aggregation of dynamic depthwise weight / bias
        aggw = jnp.dot(w1t_ref[...], att, preferred_element_type=jnp.float32)  # (ks*ks*C, 1)
        aggb = jnp.dot(bkt_ref[...], att, preferred_element_type=jnp.float32)  # (C, 1)

        # ---- flat zero-padded activation built in VMEM (no HBM pad round-trip).
        # The whole scratch is only ceil(Hp*Wp/128) vregs per sublane group, so a
        # full re-zero per step is ~3 stores; only the 2*pad*(Wp+H) border
        # positions strictly need it.
        # TODO(synk): at production H*W*C, zero the border only / add spatial tiling.
        xp_ref[...] = jnp.zeros((C, Hp * Wp), dtype=xp_ref.dtype)
        for r in range(H):                                            # static unroll
            xp_ref[:, pl.ds((r + pad) * Wp + pad, W)] = xv[:, r * W:(r + 1) * W]

        # ---- depthwise accumulate over the ks*ks taps (VPU, per-channel scales).
        # Wide-output coords: position q = ho*Wp + wo; wo in [Wo, Wp) is junk.
        acc = jnp.zeros((C, L_out), jnp.float32)
        t = 0
        for dh in range(ks):
            for dw in range(ks):
                tap = xp_ref[:, pl.ds(dh * Wp + dw, L_out)]           # (C, L_out)
                acc = acc + tap * aggw[t * C:(t + 1) * C, :]          # aligned (C,1) scale
                t += 1
        acc = acc + aggb                                              # dynamic depthwise bias

        # ---- 1x1 pointwise projection: ONE MXU matmul, contraction depth C.
        out = jnp.dot(pw_ref[...].astype(mm_dtype), acc.astype(mm_dtype),
                      preferred_element_type=jnp.float32)             # (O, L_out)
        out = out + pwb_ref[...]                                      # (O, 1) bias
        o_ref[0] = out.astype(o_ref.dtype)                            # lane-dense store

    return kernel


# ---------------------------------------------------------------------------
# Parameter construction (deterministic, kaiming-style scales)
# ---------------------------------------------------------------------------
def init_params(key, in_planes, out_planes, kernel_size, K):
    C, O, ks = in_planes, out_planes, kernel_size
    hidden = (C // 8) + 1 if C != 3 else K
    k = jax.random.split(key, 6)
    params = dict(
        fc1_w=jax.random.normal(k[0], (hidden, C), jnp.float32) * math.sqrt(2.0 / C),
        fc2_w=jax.random.normal(k[1], (K, hidden), jnp.float32) * math.sqrt(2.0 / hidden),
        fc2_b=jnp.zeros((K,), jnp.float32),                       # constant_(0) in torch
        weight1=jax.random.normal(k[2], (K, C, 1, ks, ks), jnp.float32)
        * math.sqrt(2.0 / (C * ks * ks)),
        bias=jax.random.normal(k[3], (K, O), jnp.float32) * 0.1,  # (K, out_planes)
        pw_w=jax.random.normal(k[4], (O, C), jnp.float32) * math.sqrt(1.0 / C),
        pw_b=jax.random.normal(k[5], (O,), jnp.float32) * 0.01,
    )
    return params, hidden


# ---------------------------------------------------------------------------
# Full forward (Dynamic_conv2d.forward)
# ---------------------------------------------------------------------------
def dynamic_conv2d_forward(params, x, *, kernel_size, stride=1, padding=1,
                           dilation=1, groups=1, K=4, temperature=34,
                           use_bf16_matmul=False):
    # TODO(synk): stride/dilation/groups other than the module defaults are not
    # implemented in the flat-tap indexing; reject instead of silently mis-shaping.
    assert stride == 1 and dilation == 1 and groups == 1, \
        "only the module defaults (stride=1, dilation=1, groups=1) are supported"
    assert temperature % 3 == 1

    B, C, H, W = x.shape
    O = params["pw_w"].shape[0]
    assert O == params["bias"].shape[1]
    assert O == C, "torch bias path requires out_planes == in_planes (depthwise dynamic conv)"
    hidden = params["fc1_w"].shape[0]
    ks, pad = kernel_size, padding
    Hp, Wp = H + 2 * pad, W + 2 * pad
    Ho, Wo = Hp - ks + 1, Wp - ks + 1
    L_out = (Ho - 1) * Wp + Wo

    xf = x.reshape(B, C, H * W)                                   # free metadata reshape (NCHW kept)
    # Depthwise bank rows in (kh, kw, c) order so each tap's per-channel scale is
    # an aligned (C, 1) sublane slice of the aggregation result.
    w1t = jnp.transpose(params["weight1"][:, :, 0], (2, 3, 1, 0)).reshape(ks * ks * C, K)
    bkt = params["bias"].T                                        # (O == C, K)

    kernel = make_dyconv_kernel(H, W, C, ks, pad, temperature, use_bf16_matmul)

    # TODO(synk): mark the batch-constant weight inputs pipeline_mode=pl.Buffered(1)
    # (or move the (K,1)/(O,1) vectors to SMEM) once shapes are big enough for
    # their double buffers to matter.
    # TODO(synk): for production H*W*C add a spatial grid axis with a (ks-1)-row
    # halo (manual DMA from pl.ANY) so per-step VMEM stays under v7x's 64 MiB and
    # both TensorCores get work when B is small/odd.
    out_flat = pl.pallas_call(
        kernel,
        out_shape=jax.ShapeDtypeStruct((B, O, L_out), jnp.float32),
        grid_spec=pltpu.PrefetchScalarGridSpec(
            num_scalar_prefetch=0,
            grid=(B,),
            in_specs=[
                pl.BlockSpec((1, C, H * W), lambda b: (b, 0, 0)),
                pl.BlockSpec((hidden, C), lambda b: (0, 0)),
                pl.BlockSpec((K, hidden), lambda b: (0, 0)),
                pl.BlockSpec((K, 1), lambda b: (0, 0)),
                pl.BlockSpec((ks * ks * C, K), lambda b: (0, 0)),
                pl.BlockSpec((C, K), lambda b: (0, 0)),
                pl.BlockSpec((O, C), lambda b: (0, 0)),
                pl.BlockSpec((O, 1), lambda b: (0, 0)),
            ],
            out_specs=pl.BlockSpec((1, O, L_out), lambda b: (b, 0, 0)),
            scratch_shapes=[pltpu.VMEM((C, Hp * Wp), jnp.float32)],
        ),
        compiler_params=pltpu.CompilerParams(
            dimension_semantics=("parallel",),
            vmem_limit_bytes=32 * 1024 * 1024,
        ),
    )(xf, params["fc1_w"], params["fc2_w"], params["fc2_b"].reshape(K, 1),
      w1t, bkt, params["pw_w"], params["pw_b"].reshape(O, 1))

    # Drop the (ks-1) junk columns interleaved between rows -> NCHW output.
    tail = Ho * Wp - L_out
    out_wide = jnp.pad(out_flat, ((0, 0), (0, 0), (0, tail)))
    return out_wide.reshape(B, O, Ho, Wp)[:, :, :, :Wo]


# ---------------------------------------------------------------------------
# Pure-JAX reference (mirrors the torch forward, NCHW)
# ---------------------------------------------------------------------------
def reference_forward(params, x, *, kernel_size, padding, K, temperature):
    B, C, H, W = x.shape
    ks = kernel_size
    Ho = H + 2 * padding - ks + 1
    Wo = W + 2 * padding - ks + 1

    pooled = jnp.mean(x, axis=(2, 3))                                # (B, C)
    h = jax.nn.relu(pooled @ params["fc1_w"].T)
    logits = h @ params["fc2_w"].T + params["fc2_b"]
    att = jax.nn.softmax(logits / temperature, axis=1)               # (B, K)

    agg_w = (att @ params["weight1"].reshape(K, -1)).reshape(B, C, ks, ks)
    agg_b = att @ params["bias"]                                     # (B, O) with O == C

    xp = jnp.pad(x, ((0, 0), (0, 0), (padding, padding), (padding, padding)))
    out = jnp.zeros((B, C, Ho, Wo), jnp.float32)
    for dh in range(ks):
        for dw in range(ks):
            out = out + xp[:, :, dh:dh + Ho, dw:dw + Wo] * agg_w[:, :, dh, dw][:, :, None, None]
    out = out + agg_b[:, :, None, None]
    out2 = jnp.einsum("oc,bchw->bohw", params["pw_w"], out) + params["pw_b"][None, :, None, None]
    return out2


if __name__ == "__main__":
    # Shapes consistent with the module: B=2, in_planes=out_planes=8, H=W=16,
    # kernel_size=3, padding=1, K=4, temperature=34 (34 % 3 == 1).
    B, C, O, H, W = 2, 8, 8, 16, 16
    ks, pad, K, temperature = 3, 1, 4, 34

    key = jax.random.PRNGKey(0)
    kp, kx = jax.random.split(key)
    params, hidden = init_params(kp, C, O, ks, K)
    x = jax.random.normal(kx, (B, C, H, W), jnp.float32)

    ref = reference_forward(params, x, kernel_size=ks, padding=pad, K=K,
                            temperature=temperature)

    # f32 MXU operands (strict parity).
    out = dynamic_conv2d_forward(params, x, kernel_size=ks, padding=pad, K=K,
                                 temperature=temperature, use_bf16_matmul=False)
    out = jax.block_until_ready(out)
    assert out.shape == (B, O, H, W), out.shape
    err = float(jnp.max(jnp.abs(out - ref)))
    assert err < 1e-3, f"f32 kernel max abs error vs reference: {err}"

    # bf16 MXU operands with f32 accumulation (v6e / v7x fast path).
    out_bf16 = dynamic_conv2d_forward(params, x, kernel_size=ks, padding=pad, K=K,
                                      temperature=temperature, use_bf16_matmul=True)
    out_bf16 = jax.block_until_ready(out_bf16)
    err_bf16 = float(jnp.max(jnp.abs(out_bf16 - ref)))
    assert err_bf16 < 2e-2, f"bf16-MXU kernel max abs error vs reference: {err_bf16}"

    print("KERNEL_OK")
</pallas_src>

<mosaic_0001>
module attributes {stable_mosaic.version = 11 : i64} {
  func.func @kernel(%arg0: i32, %arg1: memref<1x8x256xf32, #tpu.memory_space<vmem>>, %arg2: memref<2x8xf32, #tpu.memory_space<vmem>>, %arg3: memref<4x2xf32, #tpu.memory_space<vmem>>, %arg4: memref<4x1xf32, #tpu.memory_space<vmem>>, %arg5: memref<72x4xf32, #tpu.memory_space<vmem>>, %arg6: memref<8x4xf32, #tpu.memory_space<vmem>>, %arg7: memref<8x8xf32, #tpu.memory_space<vmem>>, %arg8: memref<8x1xf32, #tpu.memory_space<vmem>>, %arg9: memref<1x8x286xf32, #tpu.memory_space<vmem>>, %arg10: memref<8x324xf32, #tpu.memory_space<vmem>>) attributes {dimension_semantics = [#tpu.dimension_semantics<parallel>], iteration_bounds = array<i64: 2>, scalar_prefetch = 0 : i64, scratch_operands = 1 : i64, tpu.core_type = #tpu.core_type<tc>, window_params = [{transform_indices = @transform_0, window_bounds = array<i64: 1, 8, 256>}, {pipeline_mode = #tpu.pipeline_mode<synchronous>, transform_indices = @transform_1, window_bounds = array<i64: 2, 8>}, {pipeline_mode = #tpu.pipeline_mode<synchronous>, transform_indices = @transform_2, window_bounds = array<i64: 4, 2>}, {pipeline_mode = #tpu.pipeline_mode<synchronous>, transform_indices = @transform_3, window_bounds = array<i64: 4, 1>}, {pipeline_mode = #tpu.pipeline_mode<synchronous>, transform_indices = @transform_4, window_bounds = array<i64: 72, 4>}, {pipeline_mode = #tpu.pipeline_mode<synchronous>, transform_indices = @transform_5, window_bounds = array<i64: 8, 4>}, {pipeline_mode = #tpu.pipeline_mode<synchronous>, transform_indices = @transform_6, window_bounds = array<i64: 8, 8>}, {pipeline_mode = #tpu.pipeline_mode<synchronous>, transform_indices = @transform_7, window_bounds = array<i64: 8, 1>}, {transform_indices = @transform_8, window_bounds = array<i64: 1, 8, 286>}]} {
    %c0 = arith.constant 0 : index
    %c0_0 = arith.constant 0 : index
    %c0_1 = arith.constant 0 : index
    %0 = vector.load %arg1[%c0, %c0_0, %c0_1] : memref<1x8x256xf32, #tpu.memory_space<vmem>>, vector<1x8x256xf32>
    %1 = vector.shape_cast %0 : vector<1x8x256xf32> to vector<8x256xf32>
    %cst = arith.constant dense<0.000000e+00> : vector<8xf32>
    %2 = vector.multi_reduction <add>, %1, %cst [1] : vector<8x256xf32> to vector<8xf32>
    %3 = vector.shape_cast %2 : vector<8xf32> to vector<8x1xf32>
    %cst_2 = arith.constant 3.906250e-03 : f32
    %4 = vector.broadcast %cst_2 : f32 to vector<8x1xf32>
    %5 = arith.mulf %3, %4 : vector<8x1xf32>
    %c0_3 = arith.constant 0 : index
    %c0_4 = arith.constant 0 : index
    %6 = vector.load %arg2[%c0_3, %c0_4] : memref<2x8xf32, #tpu.memory_space<vmem>>, vector<2x8xf32>
    %cst_5 = arith.constant dense<0.000000e+00> : vector<2x1xf32>
    %7 = tpu.matmul %6, %5, %cst_5 {dimension_numbers = #tpu.dot_dimension_numbers<[1], [0], [0], [1], [0, 0, 1, 1], [], []>} : vector<2x8xf32>, vector<8x1xf32>, vector<2x1xf32> -> vector<2x1xf32>
    %cst_6 = arith.constant 0.000000e+00 : f32
    %8 = vector.broadcast %cst_6 : f32 to vector<2x1xf32>
    %9 = arith.maximumf %7, %8 : vector<2x1xf32>
    %c0_7 = arith.constant 0 : index
    %c0_8 = arith.constant 0 : index
    %10 = vector.load %arg3[%c0_7, %c0_8] : memref<4x2xf32, #tpu.memory_space<vmem>>, vector<4x2xf32>
    %cst_9 = arith.constant dense<0.000000e+00> : vector<4x1xf32>
    %11 = tpu.matmul %10, %9, %cst_9 {dimension_numbers = #tpu.dot_dimension_numbers<[1], [0], [0], [1], [0, 0, 1, 1], [], []>} : vector<4x2xf32>, vector<2x1xf32>, vector<4x1xf32> -> vector<4x1xf32>
    %c0_10 = arith.constant 0 : index
    %c0_11 = arith.constant 0 : index
    %12 = vector.load %arg4[%c0_10, %c0_11] : memref<4x1xf32, #tpu.memory_space<vmem>>, vector<4x1xf32>
    %13 = arith.addf %11, %12 : vector<4x1xf32>
    %cst_12 = arith.constant 0.0294117648 : f32
    %14 = vector.broadcast %cst_12 : f32 to vector<4x1xf32>
    %15 = arith.mulf %13, %14 : vector<4x1xf32>
    %cst_13 = arith.constant dense<0xFF800000> : vector<1xf32>
    %16 = vector.multi_reduction <maximumf>, %15, %cst_13 [0] : vector<4x1xf32> to vector<1xf32>
    %17 = vector.shape_cast %16 : vector<1xf32> to vector<1x1xf32>
    %18 = vector.broadcast %17 : vector<1x1xf32> to vector<4x1xf32>
    %19 = arith.subf %15, %18 : vector<4x1xf32>
    %20 = math.exp %19 : vector<4x1xf32>
    %cst_14 = arith.constant dense<0.000000e+00> : vector<1xf32>
    %21 = vector.multi_reduction <add>, %20, %cst_14 [0] : vector<4x1xf32> to vector<1xf32>
    %22 = vector.shape_cast %21 : vector<1xf32> to vector<1x1xf32>
    %23 = vector.broadcast %22 : vector<1x1xf32> to vector<4x1xf32>
    %24 = arith.divf %20, %23 : vector<4x1xf32>
    %c0_15 = arith.constant 0 : index
    %c0_16 = arith.constant 0 : index
    %25 = vector.load %arg5[%c0_15, %c0_16] : memref<72x4xf32, #tpu.memory_space<vmem>>, vector<72x4xf32>
    %cst_17 = arith.constant dense<0.000000e+00> : vector<72x1xf32>
    %26 = tpu.matmul %25, %24, %cst_17 {dimension_numbers = #tpu.dot_dimension_numbers<[1], [0], [0], [1], [0, 0, 1, 1], [], []>} : vector<72x4xf32>, vector<4x1xf32>, vector<72x1xf32> -> vector<72x1xf32>
    %c0_18 = arith.constant 0 : index
    %c0_19 = arith.constant 0 : index
    %27 = vector.load %arg6[%c0_18, %c0_19] : memref<8x4xf32, #tpu.memory_space<vmem>>, vector<8x4xf32>
    %cst_20 = arith.constant dense<0.000000e+00> : vector<8x1xf32>
    %28 = tpu.matmul %27, %24, %cst_20 {dimension_numbers = #tpu.dot_dimension_numbers<[1], [0], [0], [1], [0, 0, 1, 1], [], []>} : vector<8x4xf32>, vector<4x1xf32>, vector<8x1xf32> -> vector<8x1xf32>
    %cst_21 = arith.constant 0.000000e+00 : f32
    %29 = vector.broadcast %cst_21 : f32 to vector<8x324xf32>
    %c0_22 = arith.constant 0 : index
    %c0_23 = arith.constant 0 : index
    %30 = vector.load %arg10[%c0_22, %c0_23] : memref<8x324xf32, #tpu.memory_space<vmem>>, vector<8x324xf32>
    tpu.vector_store %arg10[%c0_22, %c0_23], %29 {strides = array<i32>} : memref<8x324xf32, #tpu.memory_space<vmem>>, vector<8x324xf32>,
    %31 = vector.extract_strided_slice %1 {offsets = [0, 0], sizes = [8, 16], strides = [1, 1]} : vector<8x256xf32> to vector<8x16xf32>
    %c0_24 = arith.constant 0 : index
    %c19 = arith.constant 19 : index
    %32 = vector.load %arg10[%c0_24, %c19] : memref<8x324xf32, #tpu.memory_space<vmem>>, vector<8x16xf32>
    tpu.vector_store %arg10[%c0_24, %c19], %31 {strides = array<i32>} : memref<8x324xf32, #tpu.memory_space<vmem>>, vector<8x16xf32>,
    %33 = vector.extract_strided_slice %1 {offsets = [0, 16], sizes = [8, 16], strides = [1, 1]} : vector<8x256xf32> to vector<8x16xf32>
    %c0_25 = arith.constant 0 : index
    %c37 = arith.constant 37 : index
    %34 = vector.load %arg10[%c0_25, %c37] : memref<8x324xf32, #tpu.memory_space<vmem>>, vector<8x16xf32>
    tpu.vector_store %arg10[%c0_25, %c37], %33 {strides = array<i32>} : memref<8x324xf32, #tpu.memory_space<vmem>>, vector<8x16xf32>,
    %35 = vector.extract_strided_slice %1 {offsets = [0, 32], sizes = [8, 16], strides = [1, 1]} : vector<8x256xf32> to vector<8x16xf32>
    %c0_26 = arith.constant 0 : index
    %c55 = arith.constant 55 : index
    %36 = vector.load %arg10[%c0_26, %c55] : memref<8x324xf32, #tpu.memory_space<vmem>>, vector<8x16xf32>
    tpu.vector_store %arg10[%c0_26, %c55], %35 {strides = array<i32>} : memref<8x324xf32, #tpu.memory_space<vmem>>, vector<8x16xf32>,
    %37 = vector.extract_strided_slice %1 {offsets = [0, 48], sizes = [8, 16], strides = [1, 1]} : vector<8x256xf32> to vector<8x16xf32>
    %c0_27 = arith.constant 0 : index
    %c73 = arith.constant 73 : index
    %38 = vector.load %arg10[%c0_27, %c73] : memref<8x324xf32, #tpu.memory_space<vmem>>, vector<8x16xf32>
    tpu.vector_store %arg10[%c0_27, %c73], %37 {strides = array<i32>} : memref<8x324xf32, #tpu.memory_space<vmem>>, vector<8x16xf32>,
    %39 = vector.extract_strided_slice %1 {offsets = [0, 64], sizes = [8, 16], strides = [1, 1]} : vector<8x256xf32> to vector<8x16xf32>
    %c0_28 = arith.constant 0 : index
    %c91 = arith.constant 91 : index
    %40 = vector.load %arg10[%c0_28, %c91] : memref<8x324xf32, #tpu.memory_space<vmem>>, vector<8x16xf32>
    tpu.vector_store %arg10[%c0_28, %c91], %39 {strides = array<i32>} : memref<8x324xf32, #tpu.memory_space<vmem>>, vector<8x16xf32>,
    %41 = vector.extract_strided_slice %1 {offsets = [0, 80], sizes = [8, 16], strides = [1, 1]} : vector<8x256xf32> to vector<8x16xf32>
    %c0_29 = arith.constant 0 : index
    %c109 = arith.constant 109 : index
    %42 = vector.load %arg10[%c0_29, %c109] : memref<8x324xf32, #tpu.memory_space<vmem>>, vector<8x16xf32>
    tpu.vector_store %arg10[%c0_29, %c109], %41 {strides = array<i32>} : memref<8x324xf32, #tpu.memory_space<vmem>>, vector<8x16xf32>,
    %43 = vector.extract_strided_slice %1 {offsets = [0, 96], sizes = [8, 16], strides = [1, 1]} : vector<8x256xf32> to vector<8x16xf32>
    %c0_30 = arith.constant 0 : index
    %c127 = arith.constant 127 : index
    %44 = vector.load %arg10[%c0_30, %c127] : memref<8x324xf32, #tpu.memory_space<vmem>>, vector<8x16xf32>
    tpu.vector_store %arg10[%c0_30, %c127], %43 {strides = array<i32>} : memref<8x324xf32, #tpu.memory_space<vmem>>, vector<8x16xf32>,
    %45 = vector.extract_strided_slice %1 {offsets = [0, 112], sizes = [8, 16], strides = [1, 1]} : vector<8x256xf32> to vector<8x16xf32>
    %c0_31 = arith.constant 0 : index
    %c145 = arith.constant 145 : index
    %46 = vector.load %arg10[%c0_31, %c145] : memref<8x324xf32, #tpu.memory_space<vmem>>, vector<8x16xf32>
    tpu.vector_store %arg10[%c0_31, %c145], %45 {strides = array<i32>} : memref<8x324xf32, #tpu.memory_space<vmem>>, vector<8x16xf32>,
    %47 = vector.extract_strided_slice %1 {offsets = [0, 128], sizes = [8, 16], strides = [1, 1]} : vector<8x256xf32> to vector<8x16xf32>
    %c0_32 = arith.constant 0 : index
    %c163 = arith.constant 163 : index
    %48 = vector.load %arg10[%c0_32, %c163] : memref<8x324xf32, #tpu.memory_space<vmem>>, vector<8x16xf32>
    tpu.vector_store %arg10[%c0_32, %c163], %47 {strides = array<i32>} : memref<8x324xf32, #tpu.memory_space<vmem>>, vector<8x16xf32>,
    %49 = vector.extract_strided_slice %1 {offsets = [0, 144], sizes = [8, 16], strides = [1, 1]} : vector<8x256xf32> to vector<8x16xf32>
    %c0_33 = arith.constant 0 : index
    %c181 = arith.constant 181 : index
    %50 = vector.load %arg10[%c0_33, %c181] : memref<8x324xf32, #tpu.memory_space<vmem>>, vector<8x16xf32>
    tpu.vector_store %arg10[%c0_33, %c181], %49 {strides = array<i32>} : memref<8x324xf32, #tpu.memory_space<vmem>>, vector<8x16xf32>,
    %51 = vector.extract_strided_slice %1 {offsets = [0, 160], sizes = [8, 16], strides = [1, 1]} : vector<8x256xf32> to vector<8x16xf32>
    %c0_34 = arith.constant 0 : index
    %c199 = arith.constant 199 : index
    %52 = vector.load %arg10[%c0_34, %c199] : memref<8x324xf32, #tpu.memory_space<vmem>>, vector<8x16xf32>
    tpu.vector_store %arg10[%c0_34, %c199], %51 {strides = array<i32>} : memref<8x324xf32, #tpu.memory_space<vmem>>, vector<8x16xf32>,
    %53 = vector.extract_strided_slice %1 {offsets = [0, 176], sizes = [8, 16], strides = [1, 1]} : vector<8x256xf32> to vector<8x16xf32>
    %c0_35 = arith.constant 0 : index
    %c217 = arith.constant 217 : index
    %54 = vector.load %arg10[%c0_35, %c217] : memref<8x324xf32, #tpu.memory_space<vmem>>, vector<8x16xf32>
    tpu.vector_store %arg10[%c0_35, %c217], %53 {strides = array<i32>} : memref<8x324xf32, #tpu.memory_space<vmem>>, vector<8x16xf32>,
    %55 = vector.extract_strided_slice %1 {offsets = [0, 192], sizes = [8, 16], strides = [1, 1]} : vector<8x256xf32> to vector<8x16xf32>
    %c0_36 = arith.constant 0 : index
    %c235 = arith.constant 235 : index
    %56 = vector.load %arg10[%c0_36, %c235] : memref<8x324xf32, #tpu.memory_space<vmem>>, vector<8x16xf32>
    tpu.vector_store %arg10[%c0_36, %c235], %55 {strides = array<i32>} : memref<8x324xf32, #tpu.memory_space<vmem>>, vector<8x16xf32>,
    %57 = vector.extract_strided_slice %1 {offsets = [0, 208], sizes = [8, 16], strides = [1, 1]} : vector<8x256xf32> to vector<8x16xf32>
    %c0_37 = arith.constant 0 : index
    %c253 = arith.constant 253 : index
    %58 = vector.load %arg10[%c0_37, %c253] : memref<8x324xf32, #tpu.memory_space<vmem>>, vector<8x16xf32>
    tpu.vector_store %arg10[%c0_37, %c253], %57 {strides = array<i32>} : memref<8x324xf32, #tpu.memory_space<vmem>>, vector<8x16xf32>,
    %59 = vector.extract_strided_slice %1 {offsets = [0, 224], sizes = [8, 16], strides = [1, 1]} : vector<8x256xf32> to vector<8x16xf32>
    %c0_38 = arith.constant 0 : index
    %c271 = arith.constant 271 : index
    %60 = vector.load %arg10[%c0_38, %c271] : memref<8x324xf32, #tpu.memory_space<vmem>>, vector<8x16xf32>
    tpu.vector_store %arg10[%c0_38, %c271], %59 {strides = array<i32>} : memref<8x324xf32, #tpu.memory_space<vmem>>, vector<8x16xf32>,
    %61 = vector.extract_strided_slice %1 {offsets = [0, 240], sizes = [8, 16], strides = [1, 1]} : vector<8x256xf32> to vector<8x16xf32>
    %c0_39 = arith.constant 0 : index
    %c289 = arith.constant 289 : index
    %62 = vector.load %arg10[%c0_39, %c289] : memref<8x324xf32, #tpu.memory_space<vmem>>, vector<8x16xf32>
    tpu.vector_store %arg10[%c0_39, %c289], %61 {strides = array<i32>} : memref<8x324xf32, #tpu.memory_space<vmem>>, vector<8x16xf32>,
    %cst_40 = arith.constant 0.000000e+00 : f32
    %63 = vector.broadcast %cst_40 : f32 to vector<8x286xf32>
    %c0_41 = arith.constant 0 : index
    %c0_42 = arith.constant 0 : index
    %64 = vector.load %arg10[%c0_41, %c0_42] : memref<8x324xf32, #tpu.memory_space<vmem>>, vector<8x286xf32>
    %65 = vector.extract_strided_slice %26 {offsets = [0, 0], sizes = [8, 1], strides = [1, 1]} : vector<72x1xf32> to vector<8x1xf32>
    %66 = vector.broadcast %65 : vector<8x1xf32> to vector<8x286xf32>
    %67 = arith.mulf %64, %66 : vector<8x286xf32>
    %68 = arith.addf %63, %67 : vector<8x286xf32>
    %c0_43 = arith.constant 0 : index
    %c1 = arith.constant 1 : index
    %69 = vector.load %arg10[%c0_43, %c1] : memref<8x324xf32, #tpu.memory_space<vmem>>, vector<8x286xf32>
    %70 = vector.extract_strided_slice %26 {offsets = [8, 0], sizes = [8, 1], strides = [1, 1]} : vector<72x1xf32> to vector<8x1xf32>
    %71 = vector.broadcast %70 : vector<8x1xf32> to vector<8x286xf32>
    %72 = arith.mulf %69, %71 : vector<8x286xf32>
    %73 = arith.addf %68, %72 : vector<8x286xf32>
    %c0_44 = arith.constant 0 : index
    %c2 = arith.constant 2 : index
    %74 = vector.load %arg10[%c0_44, %c2] : memref<8x324xf32, #tpu.memory_space<vmem>>, vector<8x286xf32>
    %75 = vector.extract_strided_slice %26 {offsets = [16, 0], sizes = [8, 1], strides = [1, 1]} : vector<72x1xf32> to vector<8x1xf32>
    %76 = vector.broadcast %75 : vector<8x1xf32> to vector<8x286xf32>
    %77 = arith.mulf %74, %76 : vector<8x286xf32>
    %78 = arith.addf %73, %77 : vector<8x286xf32>
    %c0_45 = arith.constant 0 : index
    %c18 = arith.constant 18 : index
    %79 = vector.load %arg10[%c0_45, %c18] : memref<8x324xf32, #tpu.memory_space<vmem>>, vector<8x286xf32>
    %80 = vector.extract_strided_slice %26 {offsets = [24, 0], sizes = [8, 1], strides = [1, 1]} : vector<72x1xf32> to vector<8x1xf32>
    %81 = vector.broadcast %80 : vector<8x1xf32> to vector<8x286xf32>
    %82 = arith.mulf %79, %81 : vector<8x286xf32>
    %83 = arith.addf %78, %82 : vector<8x286xf32>
    %c0_46 = arith.constant 0 : index
    %c19_47 = arith.constant 19 : index
    %84 = vector.load %arg10[%c0_46, %c19_47] : memref<8x324xf32, #tpu.memory_space<vmem>>, vector<8x286xf32>
    %85 = vector.extract_strided_slice %26 {offsets = [32, 0], sizes = [8, 1], strides = [1, 1]} : vector<72x1xf32> to vector<8x1xf32>
    %86 = vector.broadcast %85 : vector<8x1xf32> to vector<8x286xf32>
    %87 = arith.mulf %84, %86 : vector<8x286xf32>
    %88 = arith.addf %83, %87 : vector<8x286xf32>
    %c0_48 = arith.constant 0 : index
    %c20 = arith.constant 20 : index
    %89 = vector.load %arg10[%c0_48, %c20] : memref<8x324xf32, #tpu.memory_space<vmem>>, vector<8x286xf32>
    %90 = vector.extract_strided_slice %26 {offsets = [40, 0], sizes = [8, 1], strides = [1, 1]} : vector<72x1xf32> to vector<8x1xf32>
    %91 = vector.broadcast %90 : vector<8x1xf32> to vector<8x286xf32>
    %92 = arith.mulf %89, %91 : vector<8x286xf32>
    %93 = arith.addf %88, %92 : vector<8x286xf32>
    %c0_49 = arith.constant 0 : index
    %c36 = arith.constant 36 : index
    %94 = vector.load %arg10[%c0_49, %c36] : memref<8x324xf32, #tpu.memory_space<vmem>>, vector<8x286xf32>
    %95 = vector.extract_strided_slice %26 {offsets = [48, 0], sizes = [8, 1], strides = [1, 1]} : vector<72x1xf32> to vector<8x1xf32>
    %96 = vector.broadcast %95 : vector<8x1xf32> to vector<8x286xf32>
    %97 = arith.mulf %94, %96 : vector<8x286xf32>
    %98 = arith.addf %93, %97 : vector<8x286xf32>
    %c0_50 = arith.constant 0 : index
    %c37_51 = arith.constant 37 : index
    %99 = vector.load %arg10[%c0_50, %c37_51] : memref<8x324xf32, #tpu.memory_space<vmem>>, vector<8x286xf32>
    %100 = vector.extract_strided_slice %26 {offsets = [56, 0], sizes = [8, 1], strides = [1, 1]} : vector<72x1xf32> to vector<8x1xf32>
    %101 = vector.broadcast %100 : vector<8x1xf32> to vector<8x286xf32>
    %102 = arith.mulf %99, %101 : vector<8x286xf32>
    %103 = arith.addf %98, %102 : vector<8x286xf32>
    %c0_52 = arith.constant 0 : index
    %c38 = arith.constant 38 : index
    %104 = vector.load %arg10[%c0_52, %c38] : memref<8x324xf32, #tpu.memory_space<vmem>>, vector<8x286xf32>
    %105 = vector.extract_strided_slice %26 {offsets = [64, 0], sizes = [8, 1], strides = [1, 1]} : vector<72x1xf32> to vector<8x1xf32>
    %106 = vector.broadcast %105 : vector<8x1xf32> to vector<8x286xf32>
    %107 = arith.mulf %104, %106 : vector<8x286xf32>
    %108 = arith.addf %103, %107 : vector<8x286xf32>
    %109 = vector.broadcast %28 : vector<8x1xf32> to vector<8x286xf32>
    %110 = arith.addf %108, %109 : vector<8x286xf32>
    %c0_53 = arith.constant 0 : index
    %c0_54 = arith.constant 0 : index
    %111 = vector.load %arg7[%c0_53, %c0_54] : memref<8x8xf32, #tpu.memory_space<vmem>>, vector<8x8xf32>
    %cst_55 = arith.constant dense<0.000000e+00> : vector<8x286xf32>
    %112 = tpu.matmul %111, %110, %cst_55 {dimension_numbers = #tpu.dot_dimension_numbers<[1], [0], [0], [1], [0, 0, 1, 1], [], []>} : vector<8x8xf32>, vector<8x286xf32>, vector<8x286xf32> -> vector<8x286xf32>
    %c0_56 = arith.constant 0 : index
    %c0_57 = arith.constant 0 : index
    %113 = vector.load %arg8[%c0_56, %c0_57] : memref<8x1xf32, #tpu.memory_space<vmem>>, vector<8x1xf32>
    %114 = vector.broadcast %113 : vector<8x1xf32> to vector<8x286xf32>
    %115 = arith.addf %112, %114 : vector<8x286xf32>
    %c0_58 = arith.constant 0 : index
    %c0_59 = arith.constant 0 : index
    %c0_60 = arith.constant 0 : index
    %116 = vector.load %arg9[%c0_58, %c0_59, %c0_60] : memref<1x8x286xf32, #tpu.memory_space<vmem>>, vector<1x8x286xf32>
    %117 = vector.shape_cast %116 : vector<1x8x286xf32> to vector<8x286xf32>
    %118 = vector.shape_cast %115 : vector<8x286xf32> to vector<1x8x286xf32>
    tpu.vector_store %arg9[%c0_58, %c0_59, %c0_60], %118 {strides = array<i32>} : memref<1x8x286xf32, #tpu.memory_space<vmem>>, vector<1x8x286xf32>,
    return
  }
  func.func @transform_0(%arg0: i32) -> (i32, i32, i32) {
    %c0_i32 = arith.constant 0 : i32
    %c0_i32_0 = arith.constant 0 : i32
    %c0_i32_1 = arith.constant 0 : i32
    return %arg0, %c0_i32, %c0_i32_0 : i32, i32, i32
  }
  func.func @transform_1(%arg0: i32) -> (i32, i32) {
    %c0_i32 = arith.constant 0 : i32
    %c0_i32_0 = arith.constant 0 : i32
    %c0_i32_1 = arith.constant 0 : i32
    return %c0_i32, %c0_i32_0 : i32, i32
  }
  func.func @transform_2(%arg0: i32) -> (i32, i32) {
    %c0_i32 = arith.constant 0 : i32
    %c0_i32_0 = arith.constant 0 : i32
    %c0_i32_1 = arith.constant 0 : i32
    return %c0_i32, %c0_i32_0 : i32, i32
  }
  func.func @transform_3(%arg0: i32) -> (i32, i32) {
    %c0_i32 = arith.constant 0 : i32
    %c0_i32_0 = arith.constant 0 : i32
    %c0_i32_1 = arith.constant 0 : i32
    return %c0_i32, %c0_i32_0 : i32, i32
  }
  func.func @transform_4(%arg0: i32) -> (i32, i32) {
    %c0_i32 = arith.constant 0 : i32
    %c0_i32_0 = arith.constant 0 : i32
    %c0_i32_1 = arith.constant 0 : i32
    return %c0_i32, %c0_i32_0 : i32, i32
  }
  func.func @transform_5(%arg0: i32) -> (i32, i32) {
    %c0_i32 = arith.constant 0 : i32
    %c0_i32_0 = arith.constant 0 : i32
    %c0_i32_1 = arith.constant 0 : i32
    return %c0_i32, %c0_i32_0 : i32, i32
  }
  func.func @transform_6(%arg0: i32) -> (i32, i32) {
    %c0_i32 = arith.constant 0 : i32
    %c0_i32_0 = arith.constant 0 : i32
    %c0_i32_1 = arith.constant 0 : i32
    return %c0_i32, %c0_i32_0 : i32, i32
  }
  func.func @transform_7(%arg0: i32) -> (i32, i32) {
    %c0_i32 = arith.constant 0 : i32
    %c0_i32_0 = arith.constant 0 : i32
    %c0_i32_1 = arith.constant 0 : i32
    return %c0_i32, %c0_i32_0 : i32, i32
  }
  func.func @transform_8(%arg0: i32) -> (i32, i32, i32) {
    %c0_i32 = arith.constant 0 : i32
    %c0_i32_0 = arith.constant 0 : i32
    %c0_i32_1 = arith.constant 0 : i32
    return %arg0, %c0_i32, %c0_i32_0 : i32, i32, i32
  }
}

</mosaic_0001>

<llo_original>
// kernel: tpu_custom_call.1
$region0: #{tpu_custom_call.1}
  #allocation0 [shape = 'u32[]', space=smem, size = 0x4, offset = 0x4, fixed_abs, tag = 'smem constant byte address 0x4 - core index']
  #allocation1 [shape = 'u32[144,128]{1,0:T(1,128)}', space=vmem, size = 0x12000, scoped, tag = 'internal scratch']
  #allocation2 [shape = 'f32[8,324]{1,0:T(8,128)}', space=vmem, size = 0x3000, scoped, tag = 'scratch operand']
  %s0 = inlined_call_operand.vmem [shape: f32[2,8,256], index: 0, kind: input, shape index: {}]
  %s1 = inlined_call_operand.vmem [shape: f32[2,8], index: 1, kind: input, shape index: {}]
  %s2 = inlined_call_operand.vmem [shape: f32[4,2], index: 2, kind: input, shape index: {}]
  %s3 = inlined_call_operand.vmem [shape: f32[4,1], index: 3, kind: input, shape index: {}]
  %s4 = inlined_call_operand.vmem [shape: f32[72,4], index: 4, kind: input, shape index: {}]
  %s5 = inlined_call_operand.vmem [shape: f32[8,4], index: 5, kind: input, shape index: {}]
  %s6 = inlined_call_operand.vmem [shape: f32[8,8], index: 6, kind: input, shape index: {}]
  %s7 = inlined_call_operand.vmem [shape: f32[8,1], index: 7, kind: input, shape index: {}]
  %s8 = inlined_call_operand.hbm [shape: f32[2,8,286], index: 8, kind: output, shape index: {}]
  %s9 = sld [smem:[#allocation0]]
  $region65: #{tpu_custom_call.1} parent=0
    _
  %s11 = ssub.s32 1, %s9
  %s12 = scalar_select 0, %s11, %s9
  $region1: #{tpu_custom_call.1} parent=0
    #allocation3 [shape = 'u8[24576]{0}', space=vmem, size = 0x6000, scoped, tag = 'output window, operand 0']
    #allocation4 [shape = 's32[2]{0}', space=sflag, size = 0x8, scoped, tag = 'scoped memory for tpu_custom_call.1']
    %13 = vsyncpa [#allocation4], 0
    %s14 = scalar_lea.sflag [#allocation4], 1
    %15 = vsyncpa %s14, 0
    loop: start=0, step=1, limit=4
    $region2: #{tpu_custom_call.1} parent=1 // loop_pre_header
      _
    $region3: #{tpu_custom_call.1} parent=1 // loop_header
      %s17 = sphi 0, %s21
      %p18 = scmp.ge.s32.totalorder %s17, 4
      %s27 = sphi 0, %s29
      %s30 = sphi 0, %s27
      %s31 = sphi 0, %s30
      %s47 = sphi 0, %s31
      %s51 = sphi 0, %s51
      %s53 = sphi 0, %s51
      %s54 = sphi 0, %s53
      %s68 = sphi 0, %s54
      %s72 = sphi 0, %s72
      %s74 = sphi 0, %s72
      %s75 = sphi 0, %s74
      %s89 = sphi 0, %s75
      %s93 = sphi 0, %s93
      %s95 = sphi 0, %s93
      %s96 = sphi 0, %s95
      %s110 = sphi 0, %s96
      %s114 = sphi 0, %s114
      %s116 = sphi 0, %s114
      %s117 = sphi 0, %s116
      %s131 = sphi 0, %s117
      %s135 = sphi 0, %s135
      %s137 = sphi 0, %s135
      %s138 = sphi 0, %s137
      %s152 = sphi 0, %s138
      %s156 = sphi 0, %s156
      %s158 = sphi 0, %s156
      %s159 = sphi 0, %s158
      %s173 = sphi 0, %s159
      %s177 = sphi 0, %s177
      %s179 = sphi 0, %s177
      %s180 = sphi 0, %s179
      %s194 = sphi 0, %s180
      %s200 = sphi 0, %s202
      %s203 = sphi 0, %s200
      %s204 = sphi 0, %s203
      %s220 = sphi 0, %s204
    $region4: #{tpu_custom_call.1} parent=1 // loop_header_branch
      %20 = sbr.rel (%p18) target = $region8
    $region5: #{tpu_custom_call.1} parent=1 // loop_body
      %s22 = ssub.s32 %s17, 1
      %s23 = ssub.s32 %s17, 2
      %s24 = sadd.s32 %s17, 1
      %s25 = ssub.s32 %s17, %s24
      %p26 = scmp.eq.s32.totalorder %s25, 0
      %s28 = sadd.s32 %s27, 1
      %s29 = scalar_select %p26, %s27, %s28
      %p32 = pneg %p26
      %p33 = scmp.eq.s32.totalorder %s17, 1
      %p34 = por %p32, %p33
      %p35 = scmp.ne.s32.totalorder %s27, %s30
      %p36 = scmp.eq.s32.totalorder %s17, 0
      %p37 = por %p35, %p36
      %p38 = scmp.ne.s32.totalorder %s27, %s30
      %p39 = scmp.eq.s32.totalorder %s22, 1
      %p40 = por %p38, %p39
      %p41 = scmp.ne.s32.totalorder %s30, %s31
      %p42 = scmp.eq.s32.totalorder %s22, 0
      %p43 = por %p41, %p42
      %p44 = scmp.ne.s32.totalorder %s30, %s31
      %p45 = scmp.eq.s32.totalorder %s23, 1
      %p46 = por %p44, %p45
      %p48 = scmp.ne.s32.totalorder %s31, %s47
      %p49 = scmp.eq.s32.totalorder %s23, 0
      %p50 = por %p48, %p49
      %s52 = sadd.s32 %s51, 1
      %p55 = scmp.eq.s32.totalorder %s17, 1
      %p56 = scmp.ne.s32.totalorder %s51, %s53
      %p57 = scmp.eq.s32.totalorder %s17, 0
      %p58 = por %p56, %p57
      %p59 = scmp.ne.s32.totalorder %s51, %s53
      %p60 = scmp.eq.s32.totalorder %s22, 1
      %p61 = por %p59, %p60
      %p62 = scmp.ne.s32.totalorder %s53, %s54
      %p63 = scmp.eq.s32.totalorder %s22, 0
      %p64 = por %p62, %p63
      %p65 = scmp.ne.s32.totalorder %s53, %s54
      %p66 = scmp.eq.s32.totalorder %s23, 1
      %p67 = por %p65, %p66
      %p69 = scmp.ne.s32.totalorder %s54, %s68
      %p70 = scmp.eq.s32.totalorder %s23, 0
      %p71 = por %p69, %p70
      %s73 = sadd.s32 %s72, 1
      %p76 = scmp.eq.s32.totalorder %s17, 1
      %p77 = scmp.ne.s32.totalorder %s72, %s74
      %p78 = scmp.eq.s32.totalorder %s17, 0
      %p79 = por %p77, %p78
      %p80 = scmp.ne.s32.totalorder %s72, %s74
      %p81 = scmp.eq.s32.totalorder %s22, 1
      %p82 = por %p80, %p81
      %p83 = scmp.ne.s32.totalorder %s74, %s75
      %p84 = scmp.eq.s32.totalorder %s22, 0
      %p85 = por %p83, %p84
      %p86 = scmp.ne.s32.totalorder %s74, %s75
      %p87 = scmp.eq.s32.totalorder %s23, 1
      %p88 = por %p86, %p87
      %p90 = scmp.ne.s32.totalorder %s75, %s89
      %p91 = scmp.eq.s32.totalorder %s23, 0
      %p92 = por %p90, %p91
      %s94 = sadd.s32 %s93, 1
      %p97 = scmp.eq.s32.totalorder %s17, 1
      %p98 = scmp.ne.s32.totalorder %s93, %s95
      %p99 = scmp.eq.s32.totalorder %s17, 0
      %p100 = por %p98, %p99
      %p101 = scmp.ne.s32.totalorder %s93, %s95
      %p102 = scmp.eq.s32.totalorder %s22, 1
      %p103 = por %p101, %p102
      %p104 = scmp.ne.s32.totalorder %s95, %s96
      %p105 = scmp.eq.s32.totalorder %s22, 0
      %p106 = por %p104, %p105
      %p107 = scmp.ne.s32.totalorder %s95, %s96
      %p108 = scmp.eq.s32.totalorder %s23, 1
      %p109 = por %p107, %p108
      %p111 = scmp.ne.s32.totalorder %s96, %s110
      %p112 = scmp.eq.s32.totalorder %s23, 0
      %p113 = por %p111, %p112
      %s115 = sadd.s32 %s114, 1
      %p118 = scmp.eq.s32.totalorder %s17, 1
      %p119 = scmp.ne.s32.totalorder %s114, %s116
      %p120 = scmp.eq.s32.totalorder %s17, 0
      %p121 = por %p119, %p120
      %p122 = scmp.ne.s32.totalorder %s114, %s116
      %p123 = scmp.eq.s32.totalorder %s22, 1
      %p124 = por %p122, %p123
      %p125 = scmp.ne.s32.totalorder %s116, %s117
      %p126 = scmp.eq.s32.totalorder %s22, 0
      %p127 = por %p125, %p126
      %p128 = scmp.ne.s32.totalorder %s116, %s117
      %p129 = scmp.eq.s32.totalorder %s23, 1
      %p130 = por %p128, %p129
      %p132 = scmp.ne.s32.totalorder %s117, %s131
      %p133 = scmp.eq.s32.totalorder %s23, 0
      %p134 = por %p132, %p133
      %s136 = sadd.s32 %s135, 1
      %p139 = scmp.eq.s32.totalorder %s17, 1
      %p140 = scmp.ne.s32.totalorder %s135, %s137
      %p141 = scmp.eq.s32.totalorder %s17, 0
      %p142 = por %p140, %p141
      %p143 = scmp.ne.s32.totalorder %s135, %s137
      %p144 = scmp.eq.s32.totalorder %s22, 1
      %p145 = por %p143, %p144
      %p146 = scmp.ne.s32.totalorder %s137, %s138
      %p147 = scmp.eq.s32.totalorder %s22, 0
      %p148 = por %p146, %p147
      %p149 = scmp.ne.s32.totalorder %s137, %s138
      %p150 = scmp.eq.s32.totalorder %s23, 1
      %p151 = por %p149, %p150
      %p153 = scmp.ne.s32.totalorder %s138, %s152
      %p154 = scmp.eq.s32.totalorder %s23, 0
      %p155 = por %p153, %p154
      %s157 = sadd.s32 %s156, 1
      %p160 = scmp.eq.s32.totalorder %s17, 1
      %p161 = scmp.ne.s32.totalorder %s156, %s158
      %p162 = scmp.eq.s32.totalorder %s17, 0
      %p163 = por %p161, %p162
      %p164 = scmp.ne.s32.totalorder %s156, %s158
      %p165 = scmp.eq.s32.totalorder %s22, 1
      %p166 = por %p164, %p165
      %p167 = scmp.ne.s32.totalorder %s158, %s159
      %p168 = scmp.eq.s32.totalorder %s22, 0
      %p169 = por %p167, %p168
      %p170 = scmp.ne.s32.totalorder %s158, %s159
      %p171 = scmp.eq.s32.totalorder %s23, 1
      %p172 = por %p170, %p171
      %p174 = scmp.ne.s32.totalorder %s159, %s173
      %p175 = scmp.eq.s32.totalorder %s23, 0
      %p176 = por %p174, %p175
      %s178 = sadd.s32 %s177, 1
      %p181 = scmp.eq.s32.totalorder %s17, 1
      %p182 = scmp.ne.s32.totalorder %s177, %s179
      %p183 = scmp.eq.s32.totalorder %s17, 0
      %p184 = por %p182, %p183
      %p185 = scmp.ne.s32.totalorder %s177, %s179
      %p186 = scmp.eq.s32.totalorder %s22, 1
      %p187 = por %p185, %p186
      %p188 = scmp.ne.s32.totalorder %s179, %s180
      %p189 = scmp.eq.s32.totalorder %s22, 0
      %p190 = por %p188, %p189
      %p191 = scmp.ne.s32.totalorder %s179, %s180
      %p192 = scmp.eq.s32.totalorder %s23, 1
      %p193 = por %p191, %p192
      %p195 = scmp.ne.s32.totalorder %s180, %s194
      %p196 = scmp.eq.s32.totalorder %s23, 0
      %p197 = por %p195, %p196
      %s198 = ssub.s32 %s17, %s24
      %p199 = scmp.eq.s32.totalorder %s198, 0
      %s201 = sadd.s32 %s200, 1
      %s202 = scalar_select %p199, %s200, %s201
      %p205 = pneg %p199
      %p206 = scmp.eq.s32.totalorder %s17, 1
      %p207 = por %p205, %p206
      %p208 = scmp.ne.s32.totalorder %s200, %s203
      %p209 = scmp.eq.s32.totalorder %s17, 0
      %p210 = por %p208, %p209
      %p211 = scmp.ne.s32.totalorder %s200, %s203
      %p212 = scmp.eq.s32.totalorder %s22, 1
      %p213 = por %p211, %p212
      %p214 = scmp.ne.s32.totalorder %s203, %s204
      %p215 = scmp.eq.s32.totalorder %s22, 0
      %p216 = por %p214, %p215
      %p217 = scmp.ne.s32.totalorder %s203, %s204
      %p218 = scmp.eq.s32.totalorder %s23, 1
      %p219 = por %p217, %p218
      %p221 = scmp.ne.s32.totalorder %s204, %s220
      %p222 = scmp.eq.s32.totalorder %s23, 0
      %p223 = por %p221, %p222
      %p224 = scmp.le.s32.totalorder 1, %s17
      %p225 = scmp.lt.s32.totalorder %s17, 3
      %p226 = pnand %p224, %p225
      %p227 = pneg %p226
      // Predicated region
      $region9: #{tpu_custom_call.1} parent=5 // pred_check
        _
      $region10: #{tpu_custom_call.1} parent=5 // pred_check_branch
        %229 = sbr.rel (%p226) target = $region12
      $region11: #{tpu_custom_call.1} parent=5 // pred_region
        %s230 = ssub.s32 %s17, 1
        // Predicated region
        $region13: #{tpu_custom_call.1} parent=11 // pred_check
          %p231 = pneg %p64
        $region14: #{tpu_custom_call.1} parent=11 // pred_check_branch
          %233 = sbr.rel (%p231) target = $region16
        $region15: #{tpu_custom_call.1} parent=11 // pred_region
          _
        $region16: #{tpu_custom_call.1} parent=11 // pred_fallthru
          _
        // Predicated region
        $region17: #{tpu_custom_call.1} parent=11 // pred_check
          %p234 = pneg %p85
        $region18: #{tpu_custom_call.1} parent=11 // pred_check_branch
          %236 = sbr.rel (%p234) target = $region20
        $region19: #{tpu_custom_call.1} parent=11 // pred_region
          _
        $region20: #{tpu_custom_call.1} parent=11 // pred_fallthru
          _
        // Predicated region
        $region21: #{tpu_custom_call.1} parent=11 // pred_check
          %p237 = pneg %p106
        $region22: #{tpu_custom_call.1} parent=11 // pred_check_branch
          %239 = sbr.rel (%p237) target = $region24
        $region23: #{tpu_custom_call.1} parent=11 // pred_region
          _
        $region24: #{tpu_custom_call.1} parent=11 // pred_fallthru
          _
        // Predicated region
        $region25: #{tpu_custom_call.1} parent=11 // pred_check
          %p240 = pneg %p127
        $region26: #{tpu_custom_call.1} parent=11 // pred_check_branch
          %242 = sbr.rel (%p240) target = $region28
        $region27: #{tpu_custom_call.1} parent=11 // pred_region
          _
        $region28: #{tpu_custom_call.1} parent=11 // pred_fallthru
          _
        // Predicated region
        $region29: #{tpu_custom_call.1} parent=11 // pred_check
          %p243 = pneg %p148
        $region30: #{tpu_custom_call.1} parent=11 // pred_check_branch
          %245 = sbr.rel (%p243) target = $region32
        $region31: #{tpu_custom_call.1} parent=11 // pred_region
          _
        $region32: #{tpu_custom_call.1} parent=11 // pred_fallthru
          _
        // Predicated region
        $region33: #{tpu_custom_call.1} parent=11 // pred_check
          %p246 = pneg %p169
        $region34: #{tpu_custom_call.1} parent=11 // pred_check_branch
          %248 = sbr.rel (%p246) target = $region36
        $region35: #{tpu_custom_call.1} parent=11 // pred_region
          _
        $region36: #{tpu_custom_call.1} parent=11 // pred_fallthru
          _
        // Predicated region
        $region37: #{tpu_custom_call.1} parent=11 // pred_check
          %p249 = pneg %p190
        $region38: #{tpu_custom_call.1} parent=11 // pred_check_branch
          %251 = sbr.rel (%p249) target = $region40
        $region39: #{tpu_custom_call.1} parent=11 // pred_region
          _
        $region40: #{tpu_custom_call.1} parent=11 // pred_fallthru
          _
      $region12: #{tpu_custom_call.1} parent=5 // pred_fallthru
        _
      %p252 = scmp.lt.s32.totalorder %s17, 2
      // Predicated region
      $region41: #{tpu_custom_call.1} parent=5 // pred_check
        %p253 = pneg %p252
      $region42: #{tpu_custom_call.1} parent=5 // pred_check_branch
        %255 = sbr.rel (%p253) target = $region44
      $region43: #{tpu_custom_call.1} parent=5 // pred_region
        // Predicated region
        $region45: #{tpu_custom_call.1} parent=43 // pred_check
          %p256 = pneg %p37
        $region46: #{tpu_custom_call.1} parent=43 // pred_check_branch
          %258 = sbr.rel (%p256) target = $region48
        $region47: #{tpu_custom_call.1} parent=43 // pred_region
          %p259 = scmp.lt.s32.totalorder %s17, 1
          %s260 = scalar_select %p259, %s17, 1
          %s261 = smul.addr %s260, 2
          %s262 = smul.addr %s261, 8
          %s263 = scalar_lea.vmem %s0, %s262
        $region48: #{tpu_custom_call.1} parent=43 // pred_fallthru
          _
      $region44: #{tpu_custom_call.1} parent=5 // pred_fallthru
        _
      %p264 = scmp.le.s32.totalorder 1, %s17
      %p265 = scmp.lt.s32.totalorder %s17, 3
      %p266 = pnand %p264, %p265
      %p267 = pneg %p266
      // Predicated region
      $region49: #{tpu_custom_call.1} parent=5 // pred_check
        _
      $region50: #{tpu_custom_call.1} parent=5 // pred_check_branch
        %269 = sbr.rel (%p266) target = $region52
      $region51: #{tpu_custom_call.1} parent=5 // pred_region
        %s270 = ssub.s32 %s17, 1
        %p271 = scmp.lt.s32.totalorder %s22, 1
        %s272 = scalar_select %p271, %s22, 1
        %s273 = smul.addr %s272, 2
        %s274 = smul.addr %s273, 8
        %s275 = scalar_lea.vmem %s0, %s274
        %p276 = pneg %p43
        %p277 = pneg %p40
        %p278 = pneg %p64
        %p279 = pneg %p61
        %p280 = pneg %p85
        %p281 = pneg %p82
        %p282 = pneg %p106
        %p283 = pneg %p103
        %p284 = pneg %p127
        %p285 = pneg %p124
        %p286 = pneg %p148
        %p287 = pneg %p145
        %p288 = pneg %p169
        %p289 = pneg %p166
        %p290 = pneg %p190
        %p291 = pneg %p187
        %p292 = pneg %p216
        %p293 = pneg %p213
        %s294 = sand.u32 %s203, 1
        %s295 = scalar_lea.sflag [#allocation4], %s294
        %s296 = sand.u32 %s203, 1
        %s297 = smul.addr %s296, 24
        %s298 = scalar_lea.vmem [#allocation3], %s297
        %p299 = scmp.lt.s32.totalorder %s22, 1
        %s300 = scalar_select %p299, %s22, 1
        %s301 = smul.addr %s300, 2
        %s302 = smul.addr %s301, 8
        %s303 = scalar_lea.vmem %s0, %s302
        %v304 = vld [vmem:[%s303] sm:$0xff]
        %v305 = vld [vmem:[%s303 + $0x8] sm:$0xff]
        %v306 = vadd.f32 %v304, %v305
        %307 = vadd.xlane.f32.xlu0 %v306
        %v308 = vpop.xlane.xlu0 %307
        %v309 = vmul.f32 %v308, 0.00390625
        %v310 = vld [vmem:[%s1] sm:$0x3]
        %vm311 = vcmask 64512
        %v313 = vsel %vm311, %v310, 0
        %315 = vmatprep.subr.mxu0 0.0
        %316 = vmatpush1.msra.mxu0 %v309
        %317 = vmatprep.subr.mxu0 0.0
        %318 = vmatpush1.msra.mxu0 0.0
        %319 = vmatprep.subr.mxu0 0.0
        %320 = vmatpush1.msra.mxu0 0.0
        %321 = vmatprep.subr.mxu0 0.0
        %322 = vmatpush1.msra.mxu0 0.0
        %323 = vmatprep.subr.mxu0 0.0
        %324 = vmatpush1.msra.mxu0 0.0
        %325 = vmatprep.subr.mxu0 0.0
        %326 = vmatpush1.msra.mxu0 0.0
        %327 = vmatprep.subr.mxu0 0.0
        %328 = vmatpush1.msra.mxu0 0.0
        %329 = vmatprep.subr.mxu0 0.0
        %330 = vmatpush1.msra.mxu0 0.0
        %331 = vmatprep.subr.mxu0 0.0
        %332 = vmatpush1.msra.mxu0 0.0
        %333 = vmatprep.subr.mxu0 0.0
        %334 = vmatpush1.msra.mxu0 0.0
        %335 = vmatprep.subr.mxu0 0.0
        %336 = vmatpush1.msra.mxu0 0.0
        %337 = vmatprep.subr.mxu0 0.0
        %338 = vmatpush1.msra.mxu0 0.0
        %339 = vmatprep.subr.mxu0 0.0
        %340 = vmatpush1.msra.mxu0 0.0
        %341 = vmatprep.subr.mxu0 0.0
        %342 = vmatpush1.msra.mxu0 0.0
        %343 = vmatprep.subr.mxu0 0.0
        %344 = vmatpush1.msra.mxu0 0.0
        %345 = vmatprep.subr.mxu0 0.0
        %346 = vmatpush1.msra.mxu0 0.0
        %347 = vmatprep.subr.mxu0 0.0
        %348 = vmatpush1.msra.mxu0 0.0
        %349 = vmatprep.subr.mxu0 0.0
        %350 = vmatpush1.msra.mxu0 0.0
        %351 = vmatprep.subr.mxu0 0.0
        %352 = vmatpush1.msra.mxu0 0.0
        %353 = vmatprep.subr.mxu0 0.0
        %354 = vmatpush1.msra.mxu0 0.0
        %355 = vmatprep.subr.mxu0 0.0
        %356 = vmatpush1.msra.mxu0 0.0
        %357 = vmatprep.subr.mxu0 0.0
        %358 = vmatpush1.msra.mxu0 0.0
        %359 = vmatprep.subr.mxu0 0.0
        %360 = vmatpush1.msra.mxu0 0.0
        %361 = vmatprep.subr.mxu0 0.0
        %362 = vmatpush1.msra.mxu0 0.0
        %363 = vmatprep.subr.mxu0 0.0
        %364 = vmatpush1.msra.mxu0 0.0
        %365 = vmatprep.subr.mxu0 0.0
        %366 = vmatpush1.msra.mxu0 0.0
        %367 = vmatprep.subr.mxu0 0.0
        %368 = vmatpush1.msra.mxu0 0.0
        %369 = vmatprep.subr.mxu0 0.0
        %370 = vmatpush1.msra.mxu0 0.0
        %371 = vmatprep.subr.mxu0 0.0
        %372 = vmatpush1.msra.mxu0 0.0
        %373 = vmatprep.subr.mxu0 0.0
        %374 = vmatpush1.msra.mxu0 0.0
        %375 = vmatprep.subr.mxu0 0.0
        %376 = vmatpush1.msra.mxu0 0.0
        %377 = vmatprep.subr.mxu0 0.0
        %378 = vmatpush1.msra.mxu0 0.0
        %379 = vmatprep.mubr.f32.mxu0 0.0
        %380 = vmatmul.mubr.f32.gmra.mrb[0].mxu0 %v313
        %v381 = vpop.f32.mrb[0].mxu0
        %v382 = vadd.f32 0.0, %v381
        %v383 = vpop.f32.mrb[0].mxu0
        %384 = vdwg.mxu0
        %v385 = vmax.f32 %v382, 0.0
        %v386 = vld [vmem:[%s2] sm:$0xf]
        %v387 = vld [vmem:[%s3] sm:$0xf]
        %vm388 = vcmask 15360
        %v390 = vsel %vm388, %v386, 0
        %vm392 = vcmask 1041408
        %v394 = vsel %vm392, %v385, 0
        %396 = vmatprep.subr.mxu0 0.0
        %397 = vmatpush1.msra.mxu0 %v394
        %398 = vmatprep.subr.mxu0 0.0
        %399 = vmatpush1.msra.mxu0 0.0
        %400 = vmatprep.subr.mxu0 0.0
        %401 = vmatpush1.msra.mxu0 0.0
        %402 = vmatprep.subr.mxu0 0.0
        %403 = vmatpush1.msra.mxu0 0.0
        %404 = vmatprep.subr.mxu0 0.0
        %405 = vmatpush1.msra.mxu0 0.0
        %406 = vmatprep.subr.mxu0 0.0
        %407 = vmatpush1.msra.mxu0 0.0
        %408 = vmatprep.subr.mxu0 0.0
        %409 = vmatpush1.msra.mxu0 0.0
        %410 = vmatprep.subr.mxu0 0.0
        %411 = vmatpush1.msra.mxu0 0.0
        %412 = vmatprep.subr.mxu0 0.0
        %413 = vmatpush1.msra.mxu0 0.0
        %414 = vmatprep.subr.mxu0 0.0
        %415 = vmatpush1.msra.mxu0 0.0
        %416 = vmatprep.subr.mxu0 0.0
        %417 = vmatpush1.msra.mxu0 0.0
        %418 = vmatprep.subr.mxu0 0.0
        %419 = vmatpush1.msra.mxu0 0.0
        %420 = vmatprep.subr.mxu0 0.0
        %421 = vmatpush1.msra.mxu0 0.0
        %422 = vmatprep.subr.mxu0 0.0
        %423 = vmatpush1.msra.mxu0 0.0
        %424 = vmatprep.subr.mxu0 0.0
        %425 = vmatpush1.msra.mxu0 0.0
        %426 = vmatprep.subr.mxu0 0.0
        %427 = vmatpush1.msra.mxu0 0.0
        %428 = vmatprep.subr.mxu0 0.0
        %429 = vmatpush1.msra.mxu0 0.0
        %430 = vmatprep.subr.mxu0 0.0
        %431 = vmatpush1.msra.mxu0 0.0
        %432 = vmatprep.subr.mxu0 0.0
        %433 = vmatpush1.msra.mxu0 0.0
        %434 = vmatprep.subr.mxu0 0.0
        %435 = vmatpush1.msra.mxu0 0.0
        %436 = vmatprep.subr.mxu0 0.0
        %437 = vmatpush1.msra.mxu0 0.0
        %438 = vmatprep.subr.mxu0 0.0
        %439 = vmatpush1.msra.mxu0 0.0
        %440 = vmatprep.subr.mxu0 0.0
        %441 = vmatpush1.msra.mxu0 0.0
        %442 = vmatprep.subr.mxu0 0.0
        %443 = vmatpush1.msra.mxu0 0.0
        %444 = vmatprep.subr.mxu0 0.0
        %445 = vmatpush1.msra.mxu0 0.0
        %446 = vmatprep.subr.mxu0 0.0
        %447 = vmatpush1.msra.mxu0 0.0
        %448 = vmatprep.subr.mxu0 0.0
        %449 = vmatpush1.msra.mxu0 0.0
        %450 = vmatprep.subr.mxu0 0.0
        %451 = vmatpush1.msra.mxu0 0.0
        %452 = vmatprep.subr.mxu0 0.0
        %453 = vmatpush1.msra.mxu0 0.0
        %454 = vmatprep.subr.mxu0 0.0
        %455 = vmatpush1.msra.mxu0 0.0
        %456 = vmatprep.subr.mxu0 0.0
        %457 = vmatpush1.msra.mxu0 0.0
        %458 = vmatprep.subr.mxu0 0.0
        %459 = vmatpush1.msra.mxu0 0.0
        %460 = vmatprep.mubr.f32.mxu0 0.0
        %461 = vmatmul.mubr.f32.gmra.mrb[0].mxu0 %v390
        %v462 = vpop.f32.mrb[0].mxu0
        %v463 = vadd.f32 %v387, %v462
        %v464 = vpop.f32.mrb[0].mxu0
        %465 = vdwg.mxu0
        %v466 = vmul.f32 %v463, 0.029411765
        %vm467 = vcmask 3072
        %v468 = vsel %vm467, %v466, -inf
        %v469 = vrot.slane %v468, 4
        %v470 = vmax.f32 %v468, %v469
        %v471 = vrot.slane %v470, 2
        %v472 = vmax.f32 %v470, %v471
        %v473 = vrot.slane %v472, 1
        %v474 = vmax.f32 %v472, %v473
        %v475 = vsub.f32 %v466, %v474
        %v476 = vmul.f32 %v475, 1.442695
        %v477 = vpow.pop %v476
        %v478 = vsel %vm467, %v477, 0.0
        %v479 = vrot.slane %v478, 4
        %v480 = vadd.f32 %v478, %v479
        %v481 = vrot.slane %v480, 2
        %v482 = vadd.f32 %v480, %v481
        %v483 = vrot.slane %v482, 1
        %v484 = vadd.f32 %v482, %v483
        %v485 = vrcp.pop %v484
        %v486 = vmul.f32 %v477, %v485
        %v487 = vld [vmem:[%s4] sm:$0xff]
        %v488 = vld [vmem:[%s4 + $0x8] sm:$0xff]
        %v489 = vld [vmem:[%s4 + $0x10] sm:$0xff]
        %v490 = vld [vmem:[%s4 + $0x18] sm:$0xff]
        %v491 = vld [vmem:[%s4 + $0x20] sm:$0xff]
        %v492 = vld [vmem:[%s4 + $0x28] sm:$0xff]
        %v493 = vld [vmem:[%s4 + $0x30] sm:$0xff]
        %v494 = vld [vmem:[%s4 + $0x38] sm:$0xff]
        %v495 = vld [vmem:[%s4 + $0x40] sm:$0xff]
        %vm496 = vcmask 31744
        %v498 = vsel %vm496, %v487, 0
        %v501 = vsel %vm496, %v488, 0
        %v504 = vsel %vm496, %v489, 0
        %v507 = vsel %vm496, %v490, 0
        %v510 = vsel %vm496, %v491, 0
        %v513 = vsel %vm496, %v492, 0
        %v516 = vsel %vm496, %v493, 0
        %v519 = vsel %vm496, %v494, 0
        %v522 = vsel %vm496, %v495, 0
        %vm524 = vcmask 1043456
        %v526 = vsel %vm524, %v486, 0
        %528 = vmatprep.subr.mxu0 0.0
        %529 = vmatpush1.msra.mxu0 %v526
        %530 = vmatprep.subr.mxu0 0.0
        %531 = vmatpush1.msra.mxu0 0.0
        %532 = vmatprep.subr.mxu0 0.0
        %533 = vmatpush1.msra.mxu0 0.0
        %534 = vmatprep.subr.mxu0 0.0
        %535 = vmatpush1.msra.mxu0 0.0
        %536 = vmatprep.subr.mxu0 0.0
        %537 = vmatpush1.msra.mxu0 0.0
        %538 = vmatprep.subr.mxu0 0.0
        %539 = vmatpush1.msra.mxu0 0.0
        %540 = vmatprep.subr.mxu0 0.0
        %541 = vmatpush1.msra.mxu0 0.0
        %542 = vmatprep.subr.mxu0 0.0
        %543 = vmatpush1.msra.mxu0 0.0
        %544 = vmatprep.subr.mxu0 0.0
        %545 = vmatpush1.msra.mxu0 0.0
        %546 = vmatprep.subr.mxu0 0.0
        %547 = vmatpush1.msra.mxu0 0.0
        %548 = vmatprep.subr.mxu0 0.0
        %549 = vmatpush1.msra.mxu0 0.0
        %550 = vmatprep.subr.mxu0 0.0
        %551 = vmatpush1.msra.mxu0 0.0
        %552 = vmatprep.subr.mxu0 0.0
        %553 = vmatpush1.msra.mxu0 0.0
        %554 = vmatprep.subr.mxu0 0.0
        %555 = vmatpush1.msra.mxu0 0.0
        %556 = vmatprep.subr.mxu0 0.0
        %557 = vmatpush1.msra.mxu0 0.0
        %558 = vmatprep.subr.mxu0 0.0
        %559 = vmatpush1.msra.mxu0 0.0
        %560 = vmatprep.subr.mxu0 0.0
        %561 = vmatpush1.msra.mxu0 0.0
        %562 = vmatprep.subr.mxu0 0.0
        %563 = vmatpush1.msra.mxu0 0.0
        %564 = vmatprep.subr.mxu0 0.0
        %565 = vmatpush1.msra.mxu0 0.0
        %566 = vmatprep.subr.mxu0 0.0
        %567 = vmatpush1.msra.mxu0 0.0
        %568 = vmatprep.subr.mxu0 0.0
        %569 = vmatpush1.msra.mxu0 0.0
        %570 = vmatprep.subr.mxu0 0.0
        %571 = vmatpush1.msra.mxu0 0.0
        %572 = vmatprep.subr.mxu0 0.0
        %573 = vmatpush1.msra.mxu0 0.0
        %574 = vmatprep.subr.mxu0 0.0
        %575 = vmatpush1.msra.mxu0 0.0
        %576 = vmatprep.subr.mxu0 0.0
        %577 = vmatpush1.msra.mxu0 0.0
        %578 = vmatprep.subr.mxu0 0.0
        %579 = vmatpush1.msra.mxu0 0.0
        %580 = vmatprep.subr.mxu0 0.0
        %581 = vmatpush1.msra.mxu0 0.0
        %582 = vmatprep.subr.mxu0 0.0
        %583 = vmatpush1.msra.mxu0 0.0
        %584 = vmatprep.subr.mxu0 0.0
        %585 = vmatpush1.msra.mxu0 0.0
        %586 = vmatprep.subr.mxu0 0.0
        %587 = vmatpush1.msra.mxu0 0.0
        %588 = vmatprep.subr.mxu0 0.0
        %589 = vmatpush1.msra.mxu0 0.0
        %590 = vmatprep.subr.mxu0 0.0
        %591 = vmatpush1.msra.mxu0 0.0
        %592 = vmatprep.mubr.f32.mxu0 0.0
        %593 = vmatmul.mubr.f32.gmra.mrb[0].mxu0 %v498
        %v594 = vpop.f32.mrb[0].mxu0
        %v595 = vadd.f32 0.0, %v594
        %v596 = vpop.f32.mrb[0].mxu0
        %597 = vmatprep.mubr.f32.mxu0 0.0
        %598 = vmatmul.mubr.f32.gmra.mrb[0].mxu0 %v501
        %v599 = vpop.f32.mrb[0].mxu0
        %v600 = vadd.f32 0.0, %v599
        %v601 = vpop.f32.mrb[0].mxu0
        %602 = vmatprep.mubr.f32.mxu0 0.0
        %603 = vmatmul.mubr.f32.gmra.mrb[0].mxu0 %v504
        %v604 = vpop.f32.mrb[0].mxu0
        %v605 = vadd.f32 0.0, %v604
        %v606 = vpop.f32.mrb[0].mxu0
        %607 = vmatprep.mubr.f32.mxu0 0.0
        %608 = vmatmul.mubr.f32.gmra.mrb[0].mxu0 %v507
        %v609 = vpop.f32.mrb[0].mxu0
        %v610 = vadd.f32 0.0, %v609
        %v611 = vpop.f32.mrb[0].mxu0
        %612 = vmatprep.mubr.f32.mxu0 0.0
        %613 = vmatmul.mubr.f32.gmra.mrb[0].mxu0 %v510
        %v614 = vpop.f32.mrb[0].mxu0
        %v615 = vadd.f32 0.0, %v614
        %v616 = vpop.f32.mrb[0].mxu0
        %617 = vmatprep.mubr.f32.mxu0 0.0
        %618 = vmatmul.mubr.f32.gmra.mrb[0].mxu0 %v513
        %v619 = vpop.f32.mrb[0].mxu0
        %v620 = vadd.f32 0.0, %v619
        %v621 = vpop.f32.mrb[0].mxu0
        %622 = vmatprep.mubr.f32.mxu0 0.0
        %623 = vmatmul.mubr.f32.gmra.mrb[0].mxu0 %v516
        %v624 = vpop.f32.mrb[0].mxu0
        %v625 = vadd.f32 0.0, %v624
        %v626 = vpop.f32.mrb[0].mxu0
        %627 = vmatprep.mubr.f32.mxu0 0.0
        %628 = vmatmul.mubr.f32.gmra.mrb[0].mxu0 %v519
        %v629 = vpop.f32.mrb[0].mxu0
        %v630 = vadd.f32 0.0, %v629
        %v631 = vpop.f32.mrb[0].mxu0
        %632 = vmatprep.mubr.f32.mxu0 0.0
        %633 = vmatmul.mubr.f32.gmra.mrb[0].mxu0 %v522
        %v634 = vpop.f32.mrb[0].mxu0
        %v635 = vadd.f32 0.0, %v634
        %v636 = vpop.f32.mrb[0].mxu0
        %637 = vdwg.mxu0
        %v638 = vld [vmem:[%s5] sm:$0xff]
        %v640 = vsel %vm496, %v638, 0
        %642 = vmatprep.subr.mxu0 0.0
        %643 = vmatpush1.msra.mxu0 %v526
        %644 = vmatprep.subr.mxu0 0.0
        %645 = vmatpush1.msra.mxu0 0.0
        %646 = vmatprep.subr.mxu0 0.0
        %647 = vmatpush1.msra.mxu0 0.0
        %648 = vmatprep.subr.mxu0 0.0
        %649 = vmatpush1.msra.mxu0 0.0
        %650 = vmatprep.subr.mxu0 0.0
        %651 = vmatpush1.msra.mxu0 0.0
        %652 = vmatprep.subr.mxu0 0.0
        %653 = vmatpush1.msra.mxu0 0.0
        %654 = vmatprep.subr.mxu0 0.0
        %655 = vmatpush1.msra.mxu0 0.0
        %656 = vmatprep.subr.mxu0 0.0
        %657 = vmatpush1.msra.mxu0 0.0
        %658 = vmatprep.subr.mxu0 0.0
        %659 = vmatpush1.msra.mxu0 0.0
        %660 = vmatprep.subr.mxu0 0.0
        %661 = vmatpush1.msra.mxu0 0.0
        %662 = vmatprep.subr.mxu0 0.0
        %663 = vmatpush1.msra.mxu0 0.0
        %664 = vmatprep.subr.mxu0 0.0
        %665 = vmatpush1.msra.mxu0 0.0
        %666 = vmatprep.subr.mxu0 0.0
        %667 = vmatpush1.msra.mxu0 0.0
        %668 = vmatprep.subr.mxu0 0.0
        %669 = vmatpush1.msra.mxu0 0.0
        %670 = vmatprep.subr.mxu0 0.0
        %671 = vmatpush1.msra.mxu0 0.0
        %672 = vmatprep.subr.mxu0 0.0
        %673 = vmatpush1.msra.mxu0 0.0
        %674 = vmatprep.subr.mxu0 0.0
        %675 = vmatpush1.msra.mxu0 0.0
        %676 = vmatprep.subr.mxu0 0.0
        %677 = vmatpush1.msra.mxu0 0.0
        %678 = vmatprep.subr.mxu0 0.0
        %679 = vmatpush1.msra.mxu0 0.0
        %680 = vmatprep.subr.mxu0 0.0
        %681 = vmatpush1.msra.mxu0 0.0
        %682 = vmatprep.subr.mxu0 0.0
        %683 = vmatpush1.msra.mxu0 0.0
        %684 = vmatprep.subr.mxu0 0.0
        %685 = vmatpush1.msra.mxu0 0.0
        %686 = vmatprep.subr.mxu0 0.0
        %687 = vmatpush1.msra.mxu0 0.0
        %688 = vmatprep.subr.mxu0 0.0
        %689 = vmatpush1.msra.mxu0 0.0
        %690 = vmatprep.subr.mxu0 0.0
        %691 = vmatpush1.msra.mxu0 0.0
        %692 = vmatprep.subr.mxu0 0.0
        %693 = vmatpush1.msra.mxu0 0.0
        %694 = vmatprep.subr.mxu0 0.0
        %695 = vmatpush1.msra.mxu0 0.0
        %696 = vmatprep.subr.mxu0 0.0
        %697 = vmatpush1.msra.mxu0 0.0
        %698 = vmatprep.subr.mxu0 0.0
        %699 = vmatpush1.msra.mxu0 0.0
        %700 = vmatprep.subr.mxu0 0.0
        %701 = vmatpush1.msra.mxu0 0.0
        %702 = vmatprep.subr.mxu0 0.0
        %703 = vmatpush1.msra.mxu0 0.0
        %704 = vmatprep.subr.mxu0 0.0
        %705 = vmatpush1.msra.mxu0 0.0
        %706 = vmatprep.mubr.f32.mxu0 0.0
        %707 = vmatmul.mubr.f32.gmra.mrb[0].mxu0 %v640
        %v708 = vpop.f32.mrb[0].mxu0
        %v709 = vadd.f32 0.0, %v708
        %v710 = vpop.f32.mrb[0].mxu0
        %711 = vdwg.mxu0
        %712 = vst [vmem:[#allocation2] sm:$0xff] 0.0
        %713 = vst [vmem:[#allocation2 + $0x8] sm:$0xff] 0.0
        %vm714 = vcmask 556032
        %715 = vst.msk [vmem:[#allocation2 + $0x10] sm:$0xff] %vm714, 0.0
        %717 = vrot.lane.b32.xlu0 %v304, 19
        %v718 = vpop.permute.xlu0 %717
        %vm720 = vcmask 285848
        %721 = vst.msk [vmem:[#allocation2] sm:$0xff] %vm720, %v718
        %722 = vrot.lane.b32.xlu0 %v304, 21
        %v723 = vpop.permute.xlu0 %722
        %vm725 = vcmask 433448
        %726 = vst.msk [vmem:[#allocation2] sm:$0xff] %vm725, %v723
        %727 = vrot.lane.b32.xlu0 %v304, 23
        %v728 = vpop.permute.xlu0 %727
        %vm730 = vcmask 581048
        %731 = vst.msk [vmem:[#allocation2] sm:$0xff] %vm730, %v728
        %732 = vrot.lane.b32.xlu0 %v304, 25
        %v733 = vpop.permute.xlu0 %732
        %vm735 = vcmask 728648
        %736 = vst.msk [vmem:[#allocation2] sm:$0xff] %vm735, %v733
        %737 = vrot.lane.b32.xlu0 %v304, 27
        %v738 = vpop.permute.xlu0 %737
        %vm740 = vcmask 876248
        %741 = vst.msk [vmem:[#allocation2] sm:$0xff] %vm740, %v738
        %742 = vrot.lane.b32.xlu0 %v304, 29
        %v743 = vpop.permute.xlu0 %742
        %vm745 = vcmask 1023848
        %746 = vst.msk [vmem:[#allocation2] sm:$0xff] %vm745, %v743
        %747 = vrot.lane.b32.xlu0 %v304, 31
        %v748 = vpop.permute.xlu0 %747
        %vm750 = vcmask 1048568
        %751 = vst.msk [vmem:[#allocation2] sm:$0xff] %vm750, %v748
        %vm752 = vcmask 121856
        %753 = vst.msk [vmem:[#allocation2 + $0x8] sm:$0xff] %vm752, %v748
        %754 = vrot.lane.b32.xlu0 %v304, 33
        %v755 = vpop.permute.xlu0 %754
        %vm757 = vcmask 269448
        %758 = vst.msk [vmem:[#allocation2 + $0x8] sm:$0xff] %vm757, %v755
        %760 = vrot.lane.b32.xlu0 %v305, 35
        %v761 = vpop.permute.xlu0 %760
        %vm763 = vcmask 417048
        %764 = vst.msk [vmem:[#allocation2 + $0x8] sm:$0xff] %vm763, %v761
        %765 = vrot.lane.b32.xlu0 %v305, 37
        %v766 = vpop.permute.xlu0 %765
        %vm768 = vcmask 564648
        %769 = vst.msk [vmem:[#allocation2 + $0x8] sm:$0xff] %vm768, %v766
        %770 = vrot.lane.b32.xlu0 %v305, 39
        %v771 = vpop.permute.xlu0 %770
        %vm773 = vcmask 712248
        %774 = vst.msk [vmem:[#allocation2 + $0x8] sm:$0xff] %vm773, %v771
        %775 = vrot.lane.b32.xlu0 %v305, 41
        %v776 = vpop.permute.xlu0 %775
        %vm778 = vcmask 859848
        %779 = vst.msk [vmem:[#allocation2 + $0x8] sm:$0xff] %vm778, %v776
        %780 = vrot.lane.b32.xlu0 %v305, 43
        %v781 = vpop.permute.xlu0 %780
        %vm783 = vcmask 1007448
        %784 = vst.msk [vmem:[#allocation2 + $0x8] sm:$0xff] %vm783, %v781
        %785 = vrot.lane.b32.xlu0 %v305, 45
        %v786 = vpop.permute.xlu0 %785
        %vm788 = vcmask 1048552
        %789 = vst.msk [vmem:[#allocation2 + $0x8] sm:$0xff] %vm788, %v786
        %vm790 = vcmask 105472
        %791 = vst.msk [vmem:[#allocation2 + $0x10] sm:$0xff] %vm790, %v786
        %792 = vrot.lane.b32.xlu0 %v305, 47
        %v793 = vpop.permute.xlu0 %792
        %vm795 = vcmask 253048
        %796 = vst.msk [vmem:[#allocation2 + $0x10] sm:$0xff] %vm795, %v793
        %797 = vrot.lane.b32.xlu0 %v305, 49
        %v798 = vpop.permute.xlu0 %797
        %vm800 = vcmask 400648
        %801 = vst.msk [vmem:[#allocation2 + $0x10] sm:$0xff] %vm800, %v798
        %v802 = vld [vmem:[#allocation2] sm:$0xff]
        %v803 = vld [vmem:[#allocation2 + $0x8] sm:$0xff]
        %v804 = vld [vmem:[#allocation2 + $0x10] sm:$0xff]
        %806 = vset.pattern.permute.xlu0 0
        %807 = vperm.xlu0 %806, %v595
        %v808 = vpop.permute.xlu0 %807
        %v810 = vmul.f32 %v802, %v808
        %v811 = vmul.f32 %v803, %v808
        %v812 = vmul.f32 %v804, %v808
        %v813 = vadd.f32 %v810, 0.0
        %v814 = vadd.f32 %v811, 0.0
        %v815 = vadd.f32 %v812, 0.0
        %817 = vset.pattern.permute.xlu0 0
        %818 = vperm.xlu0 %817, %v600
        %v819 = vpop.permute.xlu0 %818
        %v821 = vmul.f32 %v802, %v819
        %v822 = vmul.f32 %v803, %v819
        %v823 = vmul.f32 %v804, %v819
        %827 = vrot.lane.b32.xlu0 %v821, 127
        %v828 = vpop.permute.xlu0 %827
        %829 = vrot.lane.b32.xlu0 %v822, 127
        %v830 = vpop.permute.xlu0 %829
        %831 = vrot.lane.b32.xlu0 %v823, 127
        %v832 = vpop.permute.xlu0 %831
        %vm833 = vcmask 1039360
        %v834 = vsel %vm833, %v828, %v830
        %v835 = vsel %vm833, %v830, %v832
        %v839 = vadd.f32 %v813, %v834
        %v840 = vadd.f32 %v814, %v835
        %v841 = vadd.f32 %v815, %v832
        %843 = vset.pattern.permute.xlu0 0
        %844 = vperm.xlu0 %843, %v605
        %v845 = vpop.permute.xlu0 %844
        %v847 = vmul.f32 %v802, %v845
        %v848 = vmul.f32 %v803, %v845
        %v849 = vmul.f32 %v804, %v845
        %853 = vrot.lane.b32.xlu0 %v847, 126
        %v854 = vpop.permute.xlu0 %853
        %855 = vrot.lane.b32.xlu0 %v848, 126
        %v856 = vpop.permute.xlu0 %855
        %857 = vrot.lane.b32.xlu0 %v849, 126
        %v858 = vpop.permute.xlu0 %857
        %vm859 = vcmask 1031168
        %v860 = vsel %vm859, %v854, %v856
        %v861 = vsel %vm859, %v856, %v858
        %v865 = vadd.f32 %v839, %v860
        %v866 = vadd.f32 %v840, %v861
        %v867 = vadd.f32 %v841, %v858
        %869 = vset.pattern.permute.xlu0 0
        %870 = vperm.xlu0 %869, %v610
        %v871 = vpop.permute.xlu0 %870
        %v873 = vmul.f32 %v802, %v871
        %v874 = vmul.f32 %v803, %v871
        %v875 = vmul.f32 %v804, %v871
        %879 = vrot.lane.b32.xlu0 %v873, 110
        %v880 = vpop.permute.xlu0 %879
        %881 = vrot.lane.b32.xlu0 %v874, 110
        %v882 = vpop.permute.xlu0 %881
        %883 = vrot.lane.b32.xlu0 %v875, 110
        %v884 = vpop.permute.xlu0 %883
        %vm885 = vcmask 900096
        %v886 = vsel %vm885, %v880, %v882
        %v887 = vsel %vm885, %v882, %v884
        %v891 = vadd.f32 %v865, %v886
        %v892 = vadd.f32 %v866, %v887
        %v893 = vadd.f32 %v867, %v884
        %895 = vset.pattern.permute.xlu0 0
        %896 = vperm.xlu0 %895, %v615
        %v897 = vpop.permute.xlu0 %896
        %v899 = vmul.f32 %v802, %v897
        %v900 = vmul.f32 %v803, %v897
        %v901 = vmul.f32 %v804, %v897
        %905 = vrot.lane.b32.xlu0 %v899, 109
        %v906 = vpop.permute.xlu0 %905
        %907 = vrot.lane.b32.xlu0 %v900, 109
        %v908 = vpop.permute.xlu0 %907
        %909 = vrot.lane.b32.xlu0 %v901, 109
        %v910 = vpop.permute.xlu0 %909
        %vm911 = vcmask 891904
        %v912 = vsel %vm911, %v906, %v908
        %v913 = vsel %vm911, %v908, %v910
        %v917 = vadd.f32 %v891, %v912
        %v918 = vadd.f32 %v892, %v913
        %v919 = vadd.f32 %v893, %v910
        %921 = vset.pattern.permute.xlu0 0
        %922 = vperm.xlu0 %921, %v620
        %v923 = vpop.permute.xlu0 %922
        %v925 = vmul.f32 %v802, %v923
        %v926 = vmul.f32 %v803, %v923
        %v927 = vmul.f32 %v804, %v923
        %931 = vrot.lane.b32.xlu0 %v925, 108
        %v932 = vpop.permute.xlu0 %931
        %933 = vrot.lane.b32.xlu0 %v926, 108
        %v934 = vpop.permute.xlu0 %933
        %935 = vrot.lane.b32.xlu0 %v927, 108
        %v936 = vpop.permute.xlu0 %935
        %vm937 = vcmask 883712
        %v938 = vsel %vm937, %v932, %v934
        %v939 = vsel %vm937, %v934, %v936
        %v943 = vadd.f32 %v917, %v938
        %v944 = vadd.f32 %v918, %v939
        %v945 = vadd.f32 %v919, %v936
        %947 = vset.pattern.permute.xlu0 0
        %948 = vperm.xlu0 %947, %v625
        %v949 = vpop.permute.xlu0 %948
        %v951 = vmul.f32 %v802, %v949
        %v952 = vmul.f32 %v803, %v949
        %v953 = vmul.f32 %v804, %v949
        %957 = vrot.lane.b32.xlu0 %v951, 92
        %v958 = vpop.permute.xlu0 %957
        %959 = vrot.lane.b32.xlu0 %v952, 92
        %v960 = vpop.permute.xlu0 %959
        %961 = vrot.lane.b32.xlu0 %v953, 92
        %v962 = vpop.permute.xlu0 %961
        %vm963 = vcmask 752640
        %v964 = vsel %vm963, %v958, %v960
        %v965 = vsel %vm963, %v960, %v962
        %v969 = vadd.f32 %v943, %v964
        %v970 = vadd.f32 %v944, %v965
        %v971 = vadd.f32 %v945, %v962
        %973 = vset.pattern.permute.xlu0 0
        %974 = vperm.xlu0 %973, %v630
        %v975 = vpop.permute.xlu0 %974
        %v977 = vmul.f32 %v802, %v975
        %v978 = vmul.f32 %v803, %v975
        %v979 = vmul.f32 %v804, %v975
        %983 = vrot.lane.b32.xlu0 %v977, 91
        %v984 = vpop.permute.xlu0 %983
        %985 = vrot.lane.b32.xlu0 %v978, 91
        %v986 = vpop.permute.xlu0 %985
        %987 = vrot.lane.b32.xlu0 %v979, 91
        %v988 = vpop.permute.xlu0 %987
        %vm989 = vcmask 744448
        %v990 = vsel %vm989, %v984, %v986
        %v991 = vsel %vm989, %v986, %v988
        %v995 = vadd.f32 %v969, %v990
        %v996 = vadd.f32 %v970, %v991
        %v997 = vadd.f32 %v971, %v988
        %999 = vset.pattern.permute.xlu0 0
        %1000 = vperm.xlu0 %999, %v635
        %v1001 = vpop.permute.xlu0 %1000
        %v1003 = vmul.f32 %v802, %v1001
        %v1004 = vmul.f32 %v803, %v1001
        %v1005 = vmul.f32 %v804, %v1001
        %1009 = vrot.lane.b32.xlu0 %v1003, 90
        %v1010 = vpop.permute.xlu0 %1009
        %1011 = vrot.lane.b32.xlu0 %v1004, 90
        %v1012 = vpop.permute.xlu0 %1011
        %1013 = vrot.lane.b32.xlu0 %v1005, 90
        %v1014 = vpop.permute.xlu0 %1013
        %vm1015 = vcmask 736256
        %v1016 = vsel %vm1015, %v1010, %v1012
        %v1017 = vsel %vm1015, %v1012, %v1014
        %v1021 = vadd.f32 %v995, %v1016
        %v1022 = vadd.f32 %v996, %v1017
        %v1023 = vadd.f32 %v997, %v1014
        %1025 = vset.pattern.permute.xlu0 0
        %1026 = vperm.xlu0 %1025, %v709
        %v1027 = vpop.permute.xlu0 %1026
        %v1029 = vadd.f32 %v1021, %v1027
        %v1030 = vadd.f32 %v1022, %v1027
        %v1031 = vadd.f32 %v1023, %v1027
        %v1032 = vld [vmem:[%s6] sm:$0xff]
        %v1033 = vld [vmem:[%s7] sm:$0xff]
        %1035 = vset.pattern.permute.xlu0 0
        %1036 = vperm.xlu0 %1035, %v1033
        %v1037 = vpop.permute.xlu0 %1036
        %v1040 = vsel %vm311, %v1032, 0
        %1042 = vmatprep.subr.mxu0 %v1030
        %1043 = vmatpush1.msra.mxu0 %v1029
        %1044 = vmatprep.subr.mxu0 0.0
        %1045 = vmatpush1.msra.mxu0 0.0
        %1046 = vmatprep.subr.mxu0 0.0
        %1047 = vmatpush1.msra.mxu0 0.0
        %1048 = vmatprep.subr.mxu0 0.0
        %1049 = vmatpush1.msra.mxu0 0.0
        %1050 = vmatprep.subr.mxu0 0.0
        %1051 = vmatpush1.msra.mxu0 0.0
        %1052 = vmatprep.subr.mxu0 0.0
        %1053 = vmatpush1.msra.mxu0 0.0
        %1054 = vmatprep.subr.mxu0 0.0
        %1055 = vmatpush1.msra.mxu0 0.0
        %1056 = vmatprep.subr.mxu0 0.0
        %1057 = vmatpush1.msra.mxu0 0.0
        %1058 = vmatprep.subr.mxu0 0.0
        %1059 = vmatpush1.msra.mxu0 0.0
        %1060 = vmatprep.subr.mxu0 0.0
        %1061 = vmatpush1.msra.mxu0 0.0
        %1062 = vmatprep.subr.mxu0 0.0
        %1063 = vmatpush1.msra.mxu0 0.0
        %1064 = vmatprep.subr.mxu0 0.0
        %1065 = vmatpush1.msra.mxu0 0.0
        %1066 = vmatprep.subr.mxu0 0.0
        %1067 = vmatpush1.msra.mxu0 0.0
        %1068 = vmatprep.subr.mxu0 0.0
        %1069 = vmatpush1.msra.mxu0 0.0
        %1070 = vmatprep.subr.mxu0 0.0
        %1071 = vmatpush1.msra.mxu0 0.0
        %1072 = vmatprep.subr.mxu0 0.0
        %1073 = vmatpush1.msra.mxu0 0.0
        %1074 = vmatprep.subr.mxu0 0.0
        %1075 = vmatpush1.msra.mxu0 0.0
        %1076 = vmatprep.subr.mxu0 0.0
        %1077 = vmatpush1.msra.mxu0 0.0
        %1078 = vmatprep.subr.mxu0 0.0
        %1079 = vmatpush1.msra.mxu0 0.0
        %1080 = vmatprep.subr.mxu0 0.0
        %1081 = vmatpush1.msra.mxu0 0.0
        %1082 = vmatprep.subr.mxu0 0.0
        %1083 = vmatpush1.msra.mxu0 0.0
        %1084 = vmatprep.subr.mxu0 0.0
        %1085 = vmatpush1.msra.mxu0 0.0
        %1086 = vmatprep.subr.mxu0 0.0
        %1087 = vmatpush1.msra.mxu0 0.0
        %1088 = vmatprep.subr.mxu0 0.0
        %1089 = vmatpush1.msra.mxu0 0.0
        %1090 = vmatprep.subr.mxu0 0.0
        %1091 = vmatpush1.msra.mxu0 0.0
        %1092 = vmatprep.subr.mxu0 0.0
        %1093 = vmatpush1.msra.mxu0 0.0
        %1094 = vmatprep.subr.mxu0 0.0
        %1095 = vmatpush1.msra.mxu0 0.0
        %1096 = vmatprep.subr.mxu0 0.0
        %1097 = vmatpush1.msra.mxu0 0.0
        %1098 = vmatprep.subr.mxu0 0.0
        %1099 = vmatpush1.msra.mxu0 0.0
        %1100 = vmatprep.subr.mxu0 0.0
        %1101 = vmatpush1.msra.mxu0 0.0
        %1102 = vmatprep.subr.mxu0 0.0
        %1103 = vmatpush1.msra.mxu0 0.0
        %1104 = vmatprep.subr.mxu0 0.0
        %1105 = vmatpush1.msra.mxu0 0.0
        %1106 = vmatprep.mubr.f32.mxu0 0.0
        %1107 = vmatmul.mubr.f32.gmra.mrb[0].mxu0 %v1040
        %v1108 = vpop.f32.mrb[0].mxu0
        %v1109 = vadd.f32 %v1037, %v1108
        %v1110 = vpop.f32.mrb[0].mxu0
        %v1111 = vadd.f32 %v1037, %v1110
        %1112 = vdwg.mxu0
        %1113 = vmatprep.subr.mxu0 0.0
        %1114 = vmatpush1.msra.mxu0 %v1031
        %1115 = vmatprep.subr.mxu0 0.0
        %1116 = vmatpush1.msra.mxu0 0.0
        %1117 = vmatprep.subr.mxu0 0.0
        %1118 = vmatpush1.msra.mxu0 0.0
        %1119 = vmatprep.subr.mxu0 0.0
        %1120 = vmatpush1.msra.mxu0 0.0
        %1121 = vmatprep.subr.mxu0 0.0
        %1122 = vmatpush1.msra.mxu0 0.0
        %1123 = vmatprep.subr.mxu0 0.0
        %1124 = vmatpush1.msra.mxu0 0.0
        %1125 = vmatprep.subr.mxu0 0.0
        %1126 = vmatpush1.msra.mxu0 0.0
        %1127 = vmatprep.subr.mxu0 0.0
        %1128 = vmatpush1.msra.mxu0 0.0
        %1129 = vmatprep.subr.mxu0 0.0
        %1130 = vmatpush1.msra.mxu0 0.0
        %1131 = vmatprep.subr.mxu0 0.0
        %1132 = vmatpush1.msra.mxu0 0.0
        %1133 = vmatprep.subr.mxu0 0.0
        %1134 = vmatpush1.msra.mxu0 0.0
        %1135 = vmatprep.subr.mxu0 0.0
        %1136 = vmatpush1.msra.mxu0 0.0
        %1137 = vmatprep.subr.mxu0 0.0
        %1138 = vmatpush1.msra.mxu0 0.0
        %1139 = vmatprep.subr.mxu0 0.0
        %1140 = vmatpush1.msra.mxu0 0.0
        %1141 = vmatprep.subr.mxu0 0.0
        %1142 = vmatpush1.msra.mxu0 0.0
        %1143 = vmatprep.subr.mxu0 0.0
        %1144 = vmatpush1.msra.mxu0 0.0
        %1145 = vmatprep.subr.mxu0 0.0
        %1146 = vmatpush1.msra.mxu0 0.0
        %1147 = vmatprep.subr.mxu0 0.0
        %1148 = vmatpush1.msra.mxu0 0.0
        %1149 = vmatprep.subr.mxu0 0.0
        %1150 = vmatpush1.msra.mxu0 0.0
        %1151 = vmatprep.subr.mxu0 0.0
        %1152 = vmatpush1.msra.mxu0 0.0
        %1153 = vmatprep.subr.mxu0 0.0
        %1154 = vmatpush1.msra.mxu0 0.0
        %1155 = vmatprep.subr.mxu0 0.0
        %1156 = vmatpush1.msra.mxu0 0.0
        %1157 = vmatprep.subr.mxu0 0.0
        %1158 = vmatpush1.msra.mxu0 0.0
        %1159 = vmatprep.subr.mxu0 0.0
        %1160 = vmatpush1.msra.mxu0 0.0
        %1161 = vmatprep.subr.mxu0 0.0
        %1162 = vmatpush1.msra.mxu0 0.0
        %1163 = vmatprep.subr.mxu0 0.0
        %1164 = vmatpush1.msra.mxu0 0.0
        %1165 = vmatprep.subr.mxu0 0.0
        %1166 = vmatpush1.msra.mxu0 0.0
        %1167 = vmatprep.subr.mxu0 0.0
        %1168 = vmatpush1.msra.mxu0 0.0
        %1169 = vmatprep.subr.mxu0 0.0
        %1170 = vmatpush1.msra.mxu0 0.0
        %1171 = vmatprep.subr.mxu0 0.0
        %1172 = vmatpush1.msra.mxu0 0.0
        %1173 = vmatprep.subr.mxu0 0.0
        %1174 = vmatpush1.msra.mxu0 0.0
        %1175 = vmatprep.subr.mxu0 0.0
        %1176 = vmatpush1.msra.mxu0 0.0
        %1177 = vmatprep.mubr.f32.mxu0 0.0
        %1178 = vmatmul.mubr.f32.gmra.mrb[0].mxu0 %v1040
        %v1179 = vpop.f32.mrb[0].mxu0
        %v1180 = vadd.f32 %v1037, %v1179
        %v1181 = vpop.f32.mrb[0].mxu0
        %1182 = vdwg.mxu0
        %1183 = vst [vmem:[%s298] sm:$0xff] %v1109
        %1184 = vst [vmem:[%s298 + $0x8] sm:$0xff] %v1111
        %vm1185 = vcmask 244736
        %1186 = vst.msk [vmem:[%s298 + $0x10] sm:$0xff] %vm1185, %v1180
        %s1187 = sand.u32 %s203, 1
        %s1188 = scalar_lea.sflag [#allocation4], %s1187
        %s1189 = sand.u32 %s203, 1
        %s1190 = smul.addr %s1189, 24
        %s1191 = scalar_lea.vmem [#allocation3], %s1190
        // Predicated region
        $region53: #{tpu_custom_call.1} parent=51 // pred_check
          %p1192 = pneg %p213
        $region54: #{tpu_custom_call.1} parent=51 // pred_check_branch
          %1194 = sbr.rel (%p1192) target = $region56
        $region55: #{tpu_custom_call.1} parent=51 // pred_region
          %s1196 = ssub.s32 384, 384
          %1197 = vsyncadd %s1188, %s1196
          %s1198 = smul.addr %s22, 3
          %s1199 = smul.addr %s1198, 128
          %s1200 = scalar_lea.hbm %s8, %s1199
          %s1202 = sshll.u32 %s1191, 4
          %s1203 = int_to_ptr.vmem [resolvable:$true] %s1202
          %1205 = dma.vmem_to_hbm [thread:$0]  %s1203, 384, %s1200, %s1188
        $region56: #{tpu_custom_call.1} parent=51 // pred_fallthru
          _
      $region52: #{tpu_custom_call.1} parent=5 // pred_fallthru
        _
      %p1206 = scmp.le.s32.totalorder 2, %s17
      // Predicated region
      $region57: #{tpu_custom_call.1} parent=5 // pred_check
        %p1207 = pneg %p1206
      $region58: #{tpu_custom_call.1} parent=5 // pred_check_branch
        %1209 = sbr.rel (%p1207) target = $region60
      $region59: #{tpu_custom_call.1} parent=5 // pred_region
        %s1210 = ssub.s32 %s17, 2
        // Predicated region
        $region61: #{tpu_custom_call.1} parent=59 // pred_check
          %p1211 = pneg %p219
        $region62: #{tpu_custom_call.1} parent=59 // pred_check_branch
          %1213 = sbr.rel (%p1211) target = $region64
        $region63: #{tpu_custom_call.1} parent=59 // pred_region
          %s1214 = sand.u32 %s204, 1
          %s1215 = scalar_lea.sflag [#allocation4], %s1214
          %s1216 = sand.u32 %s204, 1
          %s1217 = smul.addr %s1216, 24
          %s1218 = scalar_lea.vmem [#allocation3], %s1217
          %1219 = dma.done %s1215, 384
        $region64: #{tpu_custom_call.1} parent=59 // pred_fallthru
          _
      $region60: #{tpu_custom_call.1} parent=5 // pred_fallthru
        _
    $region6: #{tpu_custom_call.1} parent=1 // loop_footer
      %s21 = sadd.s32 1, %s17
    $region7: #{tpu_custom_call.1} parent=1 // loop_footer_branch
      %16 = sbr.rel target = $region3
    $region8: #{tpu_custom_call.1} parent=1 // loop_exit
      _
    %1220 = vsyncpa [#allocation4], 1
    %s1221 = scalar_lea.sflag [#allocation4], 1
    %1222 = vsyncpa %s1221, 1

</llo_original>
